<compile_context>
chip_gen: v7x
topology: tpu7x:2x2x1
jax: 0.10.0
libtpu: 0.0.40
codegen_flags: <defaults>
</compile_context>

<pallas_src>
import functools

import jax
import jax.numpy as jnp
from jax.experimental import pallas as pl
from jax.experimental.pallas import tpu as pltpu

# Deterministic "parameters" of the module (nn.Parameter k initialized to k_init).
NOISE_THRESH = 0.002
SKIP_THRESH = 1e-4
K_INIT = 1000.0
K_POS = max(abs(K_INIT), 1.0)          # abs(k).clamp(min=1) with k = k_init (constant)
KSIZE = 3
TARGET_LANES = 256                     # lane-block width budget (bounds vreg pressure)


def _recip(v):
    """Fast reciprocal: EUP approx + one Newton step (~1e-7 relative error)."""
    r = pl.reciprocal(v, approx=True)
    return r * (2.0 - v * r)


def _denoise_sharpen_kernel(scal_ref, xslab_ref, out_ref, np_ref, dp_ref,
                            *, C, TH, S, BL):
    """One grid step = one image group (BL lanes) x one H tile (S strips of TH rows).

    scal_ref : (23, TH, BL)  per-lane scalars, lane- and sublane-replicated:
                 rows 0..8  bilateral spatial 3x3 kernel (row-major dy,dx), normalized
                 rows 9..17 gaussian 3x3 blur kernel, normalized
                 row 18 0.5/sigma_r^2, 19 lambda, 20 1/tau, 21 gain, 22 offset
    xslab_ref: (C, S*TH + 2, BL)  reflect-padded rows of this H tile; lane axis is
               (image-in-group, padded W) so reflect columns sit inside each image's block.
    out_ref  : (C, S*TH, BL)  sharpened (pre skip-gate) result
    np_ref   : (S*TH, BL)     sum_c noise_est   (partials for the wrapper-side skip gate)
    dp_ref   : (S*TH, BL)     sum_c |detail|
    """
    for s in range(S):                                   # small static loop (S in {1,2,4})
        r0 = s * TH
        # Center pixels of this strip (dy == 1, no lane shift).
        x = xslab_ref[:, r0 + 1:r0 + 1 + TH, :]          # (C, TH, BL)

        bf_num = jnp.zeros((C, TH, BL), jnp.float32)
        bf_den = jnp.zeros((TH, BL), jnp.float32)
        gf = jnp.zeros((C, TH, BL), jnp.float32)

        half_inv_sr2 = scal_ref[18]                      # (TH, BL), no broadcast needed

        for dy in range(KSIZE):
            row = x if dy == 1 else xslab_ref[:, r0 + dy:r0 + dy + TH, :]
            row2 = row.reshape(C * TH, BL)
            for dx in range(KSIZE):
                # dx tap = lane roll (XLU); the per-image pad columns absorb the shift,
                # so kept lanes never read a neighbouring image's pixels.
                if dx == 1:
                    nb = row
                else:
                    nb = pltpu.roll(row2, (1 - dx) % BL, axis=1).reshape(C, TH, BL)
                tap = dy * KSIZE + dx
                # bilateral: L1 colour distance over channels, squared (kornia 'l1')
                cdist = jnp.sum(jnp.abs(nb - x), axis=0)          # (TH, BL)
                cw = jnp.exp(-half_inv_sr2 * (cdist * cdist))     # range kernel
                w = scal_ref[tap] * cw                            # space * range
                bf_num = bf_num + w * nb
                bf_den = bf_den + w
                gf = gf + scal_ref[9 + tap] * nb                  # gaussian blur

        # bf_den >= center spatial weight > 0 and all terms finite -> reference's
        # nan_to_num / isnan-isinf repair passes are dead and omitted.
        bf = bf_num * _recip(bf_den)

        detail = x - gf
        ad = jnp.abs(detail)
        denom = jnp.maximum(x + scal_ref[22], 1e-5)
        noise_est = jnp.minimum(ad * scal_ref[21] * _recip(denom), 10.0)   # >= 0 already
        z = noise_est * scal_ref[20]
        raw_mask = 1.0 - jnp.exp(-(z * z))        # arg <= 0; f32 underflow == clamp(-88)
        noise_mask = raw_mask * raw_mask
        detail_mask = jax.nn.sigmoid(K_POS * (ad - NOISE_THRESH))

        sharpened = bf + scal_ref[19] * detail * noise_mask * detail_mask
        out_ref[:, r0:r0 + TH, :] = jnp.clip(sharpened, 1e-5, 1.0)

        # Per-pixel partials (summed over C only); the wrapper finishes the per-image
        # reduction and applies the skip gate, keeping the kernel single-pass.
        np_ref[r0:r0 + TH, :] = jnp.sum(noise_est, axis=0)
        dp_ref[r0:r0 + TH, :] = jnp.sum(ad, axis=0)


def _gaussian1d(sigma):
    """kornia gaussian(3, sigma): taps at [-1, 0, 1], normalized to sum 1."""
    xs = jnp.array([-1.0, 0.0, 1.0], jnp.float32)
    g = jnp.exp(-(xs[None, :] ** 2) / (2.0 * sigma[:, None] ** 2))
    return g / jnp.sum(g, axis=-1, keepdims=True)          # [N, 3]


@jax.jit
def denoising_sharpening(images, params):
    """images: [B, P, H, W, 3] in [0,1]; params: [B, P, 7]. Returns [B, P, H, W, 3]."""
    B, P, H, W, C = images.shape
    N = B * P
    Wp = W + 2

    # ---------------- static tiling choices -------------------------------------------
    # Images per lane group; each image owns Wp lanes, group width padded to 128k lanes.
    G = max(1, min(N, TARGET_LANES // Wp))
    N_pad = ((N + G - 1) // G) * G
    num_nb = N_pad // G
    BL = ((G * Wp + 127) // 128) * 128

    # H strips of TH rows (sublane-full when possible), S strips per grid step.
    if H % 8 == 0:
        TH = 8
        total = H // 8
        S = min(4, max(1, total // 2))
        while total % S:
            S -= 1
    else:
        TH, S = H, 1                      # fallback: one full-height strip (block == full dim)
    TH_G = TH * S
    num_hg = H // TH_G

    x = images.reshape(N, H, W, C).astype(jnp.float32)
    p = params.reshape(N, 7).astype(jnp.float32)
    if N_pad != N:
        x = jnp.pad(x, ((0, N_pad - N), (0, 0), (0, 0), (0, 0)))
        p = jnp.pad(p, ((0, N_pad - N), (0, 0)))          # zeros clamp to valid params

    # ---------------- per-image scalar table (23 entries) -----------------------------
    sigma_s = jnp.clip(p[:, 0], 0.5, 3.0)
    sigma_r = jnp.clip(p[:, 1], 0.1, 0.5)
    sigma_f = jnp.clip(p[:, 2], 0.5, 2.0)
    lam = jnp.clip(p[:, 3], 0.3, 1.0)
    tau = jnp.clip(p[:, 4], 1.0, 3.0)
    gain = jnp.clip(p[:, 5], 0.5, 1.0)
    offset = jnp.clip(p[:, 6], 0.1, 0.5)

    gs = _gaussian1d(sigma_s)
    space_kernel = (gs[:, :, None] * gs[:, None, :]).reshape(N_pad, 9)   # dy slowest
    gg = _gaussian1d(sigma_f)
    gauss_kernel = (gg[:, :, None] * gg[:, None, :]).reshape(N_pad, 9)
    scal = jnp.concatenate(
        [space_kernel, gauss_kernel,
         (0.5 / (sigma_r ** 2))[:, None], lam[:, None], (1.0 / tau)[:, None],
         gain[:, None], offset[:, None]], axis=1)                        # (N_pad, 23)

    # Lane-replicate per image (x Wp), group, pad group lanes, sublane-replicate (x TH).
    lane_scal = jnp.repeat(scal, Wp, axis=0).reshape(num_nb, G * Wp, 23)
    lane_scal = jnp.pad(lane_scal, ((0, 0), (0, BL - G * Wp), (0, 0)), mode="edge")
    scal_tab = jnp.transpose(lane_scal, (0, 2, 1))                       # (num_nb, 23, BL)
    scal_tab = jnp.broadcast_to(scal_tab[:, :, None, :], (num_nb, 23, TH, BL))

    # ---------------- lane-packed, reflect-padded image slabs --------------------------
    xt = jnp.transpose(x, (3, 1, 0, 2))                                  # (C, H, N_pad, W)
    xt = jnp.pad(xt, ((0, 0), (0, 0), (0, 0), (1, 1)), mode="reflect")   # reflect W
    xt = xt.reshape(C, H, num_nb, G * Wp)
    if BL != G * Wp:
        xt = jnp.pad(xt, ((0, 0), (0, 0), (0, 0), (0, BL - G * Wp)))
    # Reflect-padded rows for each H tile (1-row halo each side), gathered host-side so
    # the kernel BlockSpecs stay plain Blocked dims.
    r = (jnp.arange(num_hg)[:, None] * TH_G + jnp.arange(TH_G + 2)[None, :] - 1)
    r = jnp.where(r < 0, -r, jnp.where(r >= H, 2 * H - 2 - r, r))        # reflect indices
    xsl = jnp.take(xt, r.reshape(-1), axis=1)                 # (C, num_hg*(TH_G+2), num_nb, BL)
    xsl = xsl.reshape(C, num_hg, TH_G + 2, num_nb, BL)
    xslab = jnp.transpose(xsl, (3, 1, 0, 2, 4))               # (num_nb, num_hg, C, TH_G+2, BL)

    kern = functools.partial(_denoise_sharpen_kernel, C=C, TH=TH, S=S, BL=BL)
    out, npart, dpart = pl.pallas_call(
        kern,
        out_shape=(
            jax.ShapeDtypeStruct((num_nb, C, H, BL), jnp.float32),
            jax.ShapeDtypeStruct((num_nb, num_hg, TH_G, BL), jnp.float32),
            jax.ShapeDtypeStruct((num_nb, num_hg, TH_G, BL), jnp.float32),
        ),
        grid=(num_nb, num_hg),
        in_specs=[
            pl.BlockSpec((None, 23, TH, BL), lambda nb, h: (nb, 0, 0, 0)),
            pl.BlockSpec((None, None, C, TH_G + 2, BL), lambda nb, h: (nb, h, 0, 0, 0)),
        ],
        out_specs=(
            pl.BlockSpec((None, C, TH_G, BL), lambda nb, h: (nb, 0, h, 0)),
            pl.BlockSpec((None, None, TH_G, BL), lambda nb, h: (nb, h, 0, 0)),
            pl.BlockSpec((None, None, TH_G, BL), lambda nb, h: (nb, h, 0, 0)),
        ),
        compiler_params=pltpu.CompilerParams(
            dimension_semantics=("parallel", "parallel"),
            vmem_limit_bytes=32 * 1024 * 1024,
        ),
    )(scal_tab, xslab)

    # ---------------- unpack + wrapper-side skip gate ----------------------------------
    cnt = float(C * H * W)
    o = out[..., :G * Wp].reshape(num_nb, C, H, G, Wp)[..., 1:1 + W]     # (nb, C, H, G, W)
    o = jnp.transpose(o, (0, 3, 2, 4, 1)).reshape(N_pad, H, W, C)[:N]

    def _img_sum(part):
        v = part[..., :G * Wp].reshape(num_nb, num_hg, TH_G, G, Wp)[..., 1:1 + W]
        return jnp.sum(v, axis=(1, 2, 4)).reshape(N_pad)[:N]

    avg_noise = _img_sum(npart) / cnt
    avg_detail = _img_sum(dpart) / cnt
    skip = jnp.logical_or(avg_noise < SKIP_THRESH, avg_detail < SKIP_THRESH)   # (N,)

    x_in = images.reshape(N, H, W, C).astype(jnp.float32)
    result = jnp.where(skip[:, None, None, None], jnp.clip(x_in, 1e-5, 1.0), o)
    return result.reshape(B, P, H, W, C).astype(images.dtype)


if __name__ == "__main__":
    key = jax.random.PRNGKey(0)
    k_img, k_par = jax.random.split(key)
    B, P, H, W, C = 2, 4, 16, 16, 3
    images = jax.random.uniform(k_img, (B, P, H, W, C), dtype=jnp.float32)
    params = jax.random.uniform(k_par, (B, P, 7), dtype=jnp.float32) * 2.0
    out = denoising_sharpening(images, params)
    jax.block_until_ready(out)
    assert out.shape == (B, P, H, W, C)
    assert bool(jnp.all(jnp.isfinite(out)))
    print("KERNEL_OK")
</pallas_src>

<mosaic_0001>
module attributes {stable_mosaic.version = 11 : i64} {
  func.func @_denoise_sharpen_kernel(%arg0: i32, %arg1: i32, %arg2: memref<1x23x8x256xf32, #tpu.memory_space<vmem>>, %arg3: memref<1x1x3x10x256xf32, #tpu.memory_space<vmem>>, %arg4: memref<1x3x8x256xf32, #tpu.memory_space<vmem>>, %arg5: memref<1x1x8x256xf32, #tpu.memory_space<vmem>>, %arg6: memref<1x1x8x256xf32, #tpu.memory_space<vmem>>) attributes {dimension_semantics = [#tpu.dimension_semantics<parallel>, #tpu.dimension_semantics<parallel>], iteration_bounds = array<i64: 1, 2>, scalar_prefetch = 0 : i64, scratch_operands = 0 : i64, tpu.core_type = #tpu.core_type<tc>, window_params = [{transform_indices = @transform_0, window_bounds = array<i64: 1, 23, 8, 256>}, {transform_indices = @transform_1, window_bounds = array<i64: 1, 1, 3, 10, 256>}, {transform_indices = @transform_2, window_bounds = array<i64: 1, 3, 8, 256>}, {transform_indices = @transform_3, window_bounds = array<i64: 1, 1, 8, 256>}, {transform_indices = @transform_4, window_bounds = array<i64: 1, 1, 8, 256>}]} {
    %c0 = arith.constant 0 : index
    %c0_0 = arith.constant 0 : index
    %c0_1 = arith.constant 0 : index
    %c1 = arith.constant 1 : index
    %c0_2 = arith.constant 0 : index
    %0 = vector.load %arg3[%c0, %c0_0, %c0_1, %c1, %c0_2] : memref<1x1x3x10x256xf32, #tpu.memory_space<vmem>>, vector<1x1x3x8x256xf32>
    %1 = vector.shape_cast %0 : vector<1x1x3x8x256xf32> to vector<3x8x256xf32>
    %cst = arith.constant 0.000000e+00 : f32
    %2 = vector.broadcast %cst : f32 to vector<3x8x256xf32>
    %cst_3 = arith.constant 0.000000e+00 : f32
    %3 = vector.broadcast %cst_3 : f32 to vector<8x256xf32>
    %cst_4 = arith.constant 0.000000e+00 : f32
    %4 = vector.broadcast %cst_4 : f32 to vector<3x8x256xf32>
    %c0_5 = arith.constant 0 : index
    %c18 = arith.constant 18 : index
    %c0_6 = arith.constant 0 : index
    %c0_7 = arith.constant 0 : index
    %5 = vector.load %arg2[%c0_5, %c18, %c0_6, %c0_7] : memref<1x23x8x256xf32, #tpu.memory_space<vmem>>, vector<1x1x8x256xf32>
    %6 = vector.shape_cast %5 : vector<1x1x8x256xf32> to vector<8x256xf32>
    %c0_8 = arith.constant 0 : index
    %c0_9 = arith.constant 0 : index
    %c0_10 = arith.constant 0 : index
    %c0_11 = arith.constant 0 : index
    %c0_12 = arith.constant 0 : index
    %7 = vector.load %arg3[%c0_8, %c0_9, %c0_10, %c0_11, %c0_12] : memref<1x1x3x10x256xf32, #tpu.memory_space<vmem>>, vector<1x1x3x8x256xf32>
    %8 = vector.shape_cast %7 : vector<1x1x3x8x256xf32> to vector<3x8x256xf32>
    %9 = vector.shape_cast %8 : vector<3x8x256xf32> to vector<24x256xf32>
    %c1_i32 = arith.constant 1 : i32
    %10 = tpu.dynamic_rotate %9 by %c1_i32 dim 1 : vector<24x256xf32>, i32 -> vector<24x256xf32>
    %11 = vector.shape_cast %10 : vector<24x256xf32> to vector<3x8x256xf32>
    %12 = arith.subf %11, %1 : vector<3x8x256xf32>
    %13 = math.absf %12 : vector<3x8x256xf32>
    %cst_13 = arith.constant dense<0.000000e+00> : vector<8x256xf32>
    %14 = vector.multi_reduction <add>, %13, %cst_13 [0] : vector<3x8x256xf32> to vector<8x256xf32>
    %cst_14 = arith.constant 0.000000e+00 : f32
    %15 = vector.broadcast %cst_14 : f32 to vector<8x256xf32>
    %16 = arith.subf %15, %6 : vector<8x256xf32>
    %17 = arith.mulf %14, %14 : vector<8x256xf32>
    %18 = arith.mulf %16, %17 : vector<8x256xf32>
    %19 = math.exp %18 : vector<8x256xf32>
    %c0_15 = arith.constant 0 : index
    %c0_16 = arith.constant 0 : index
    %c0_17 = arith.constant 0 : index
    %c0_18 = arith.constant 0 : index
    %20 = vector.load %arg2[%c0_15, %c0_16, %c0_17, %c0_18] : memref<1x23x8x256xf32, #tpu.memory_space<vmem>>, vector<1x1x8x256xf32>
    %21 = vector.shape_cast %20 : vector<1x1x8x256xf32> to vector<8x256xf32>
    %22 = arith.mulf %21, %19 : vector<8x256xf32>
    %23 = vector.shape_cast %22 : vector<8x256xf32> to vector<1x8x256xf32>
    %24 = vector.broadcast %23 : vector<1x8x256xf32> to vector<3x8x256xf32>
    %25 = arith.mulf %24, %11 : vector<3x8x256xf32>
    %26 = arith.addf %2, %25 : vector<3x8x256xf32>
    %27 = arith.addf %3, %22 : vector<8x256xf32>
    %c0_19 = arith.constant 0 : index
    %c9 = arith.constant 9 : index
    %c0_20 = arith.constant 0 : index
    %c0_21 = arith.constant 0 : index
    %28 = vector.load %arg2[%c0_19, %c9, %c0_20, %c0_21] : memref<1x23x8x256xf32, #tpu.memory_space<vmem>>, vector<1x1x8x256xf32>
    %29 = vector.shape_cast %28 : vector<1x1x8x256xf32> to vector<8x256xf32>
    %30 = vector.shape_cast %29 : vector<8x256xf32> to vector<1x8x256xf32>
    %31 = vector.broadcast %30 : vector<1x8x256xf32> to vector<3x8x256xf32>
    %32 = arith.mulf %31, %11 : vector<3x8x256xf32>
    %33 = arith.addf %4, %32 : vector<3x8x256xf32>
    %34 = arith.subf %8, %1 : vector<3x8x256xf32>
    %35 = math.absf %34 : vector<3x8x256xf32>
    %cst_22 = arith.constant dense<0.000000e+00> : vector<8x256xf32>
    %36 = vector.multi_reduction <add>, %35, %cst_22 [0] : vector<3x8x256xf32> to vector<8x256xf32>
    %cst_23 = arith.constant 0.000000e+00 : f32
    %37 = vector.broadcast %cst_23 : f32 to vector<8x256xf32>
    %38 = arith.subf %37, %6 : vector<8x256xf32>
    %39 = arith.mulf %36, %36 : vector<8x256xf32>
    %40 = arith.mulf %38, %39 : vector<8x256xf32>
    %41 = math.exp %40 : vector<8x256xf32>
    %c0_24 = arith.constant 0 : index
    %c1_25 = arith.constant 1 : index
    %c0_26 = arith.constant 0 : index
    %c0_27 = arith.constant 0 : index
    %42 = vector.load %arg2[%c0_24, %c1_25, %c0_26, %c0_27] : memref<1x23x8x256xf32, #tpu.memory_space<vmem>>, vector<1x1x8x256xf32>
    %43 = vector.shape_cast %42 : vector<1x1x8x256xf32> to vector<8x256xf32>
    %44 = arith.mulf %43, %41 : vector<8x256xf32>
    %45 = vector.shape_cast %44 : vector<8x256xf32> to vector<1x8x256xf32>
    %46 = vector.broadcast %45 : vector<1x8x256xf32> to vector<3x8x256xf32>
    %47 = arith.mulf %46, %8 : vector<3x8x256xf32>
    %48 = arith.addf %26, %47 : vector<3x8x256xf32>
    %49 = arith.addf %27, %44 : vector<8x256xf32>
    %c0_28 = arith.constant 0 : index
    %c10 = arith.constant 10 : index
    %c0_29 = arith.constant 0 : index
    %c0_30 = arith.constant 0 : index
    %50 = vector.load %arg2[%c0_28, %c10, %c0_29, %c0_30] : memref<1x23x8x256xf32, #tpu.memory_space<vmem>>, vector<1x1x8x256xf32>
    %51 = vector.shape_cast %50 : vector<1x1x8x256xf32> to vector<8x256xf32>
    %52 = vector.shape_cast %51 : vector<8x256xf32> to vector<1x8x256xf32>
    %53 = vector.broadcast %52 : vector<1x8x256xf32> to vector<3x8x256xf32>
    %54 = arith.mulf %53, %8 : vector<3x8x256xf32>
    %55 = arith.addf %33, %54 : vector<3x8x256xf32>
    %c255_i32 = arith.constant 255 : i32
    %56 = tpu.dynamic_rotate %9 by %c255_i32 dim 1 : vector<24x256xf32>, i32 -> vector<24x256xf32>
    %57 = vector.shape_cast %56 : vector<24x256xf32> to vector<3x8x256xf32>
    %58 = arith.subf %57, %1 : vector<3x8x256xf32>
    %59 = math.absf %58 : vector<3x8x256xf32>
    %cst_31 = arith.constant dense<0.000000e+00> : vector<8x256xf32>
    %60 = vector.multi_reduction <add>, %59, %cst_31 [0] : vector<3x8x256xf32> to vector<8x256xf32>
    %cst_32 = arith.constant 0.000000e+00 : f32
    %61 = vector.broadcast %cst_32 : f32 to vector<8x256xf32>
    %62 = arith.subf %61, %6 : vector<8x256xf32>
    %63 = arith.mulf %60, %60 : vector<8x256xf32>
    %64 = arith.mulf %62, %63 : vector<8x256xf32>
    %65 = math.exp %64 : vector<8x256xf32>
    %c0_33 = arith.constant 0 : index
    %c2 = arith.constant 2 : index
    %c0_34 = arith.constant 0 : index
    %c0_35 = arith.constant 0 : index
    %66 = vector.load %arg2[%c0_33, %c2, %c0_34, %c0_35] : memref<1x23x8x256xf32, #tpu.memory_space<vmem>>, vector<1x1x8x256xf32>
    %67 = vector.shape_cast %66 : vector<1x1x8x256xf32> to vector<8x256xf32>
    %68 = arith.mulf %67, %65 : vector<8x256xf32>
    %69 = vector.shape_cast %68 : vector<8x256xf32> to vector<1x8x256xf32>
    %70 = vector.broadcast %69 : vector<1x8x256xf32> to vector<3x8x256xf32>
    %71 = arith.mulf %70, %57 : vector<3x8x256xf32>
    %72 = arith.addf %48, %71 : vector<3x8x256xf32>
    %73 = arith.addf %49, %68 : vector<8x256xf32>
    %c0_36 = arith.constant 0 : index
    %c11 = arith.constant 11 : index
    %c0_37 = arith.constant 0 : index
    %c0_38 = arith.constant 0 : index
    %74 = vector.load %arg2[%c0_36, %c11, %c0_37, %c0_38] : memref<1x23x8x256xf32, #tpu.memory_space<vmem>>, vector<1x1x8x256xf32>
    %75 = vector.shape_cast %74 : vector<1x1x8x256xf32> to vector<8x256xf32>
    %76 = vector.shape_cast %75 : vector<8x256xf32> to vector<1x8x256xf32>
    %77 = vector.broadcast %76 : vector<1x8x256xf32> to vector<3x8x256xf32>
    %78 = arith.mulf %77, %57 : vector<3x8x256xf32>
    %79 = arith.addf %55, %78 : vector<3x8x256xf32>
    %80 = vector.shape_cast %1 : vector<3x8x256xf32> to vector<24x256xf32>
    %c1_i32_39 = arith.constant 1 : i32
    %81 = tpu.dynamic_rotate %80 by %c1_i32_39 dim 1 : vector<24x256xf32>, i32 -> vector<24x256xf32>
    %82 = vector.shape_cast %81 : vector<24x256xf32> to vector<3x8x256xf32>
    %83 = arith.subf %82, %1 : vector<3x8x256xf32>
    %84 = math.absf %83 : vector<3x8x256xf32>
    %cst_40 = arith.constant dense<0.000000e+00> : vector<8x256xf32>
    %85 = vector.multi_reduction <add>, %84, %cst_40 [0] : vector<3x8x256xf32> to vector<8x256xf32>
    %cst_41 = arith.constant 0.000000e+00 : f32
    %86 = vector.broadcast %cst_41 : f32 to vector<8x256xf32>
    %87 = arith.subf %86, %6 : vector<8x256xf32>
    %88 = arith.mulf %85, %85 : vector<8x256xf32>
    %89 = arith.mulf %87, %88 : vector<8x256xf32>
    %90 = math.exp %89 : vector<8x256xf32>
    %c0_42 = arith.constant 0 : index
    %c3 = arith.constant 3 : index
    %c0_43 = arith.constant 0 : index
    %c0_44 = arith.constant 0 : index
    %91 = vector.load %arg2[%c0_42, %c3, %c0_43, %c0_44] : memref<1x23x8x256xf32, #tpu.memory_space<vmem>>, vector<1x1x8x256xf32>
    %92 = vector.shape_cast %91 : vector<1x1x8x256xf32> to vector<8x256xf32>
    %93 = arith.mulf %92, %90 : vector<8x256xf32>
    %94 = vector.shape_cast %93 : vector<8x256xf32> to vector<1x8x256xf32>
    %95 = vector.broadcast %94 : vector<1x8x256xf32> to vector<3x8x256xf32>
    %96 = arith.mulf %95, %82 : vector<3x8x256xf32>
    %97 = arith.addf %72, %96 : vector<3x8x256xf32>
    %98 = arith.addf %73, %93 : vector<8x256xf32>
    %c0_45 = arith.constant 0 : index
    %c12 = arith.constant 12 : index
    %c0_46 = arith.constant 0 : index
    %c0_47 = arith.constant 0 : index
    %99 = vector.load %arg2[%c0_45, %c12, %c0_46, %c0_47] : memref<1x23x8x256xf32, #tpu.memory_space<vmem>>, vector<1x1x8x256xf32>
    %100 = vector.shape_cast %99 : vector<1x1x8x256xf32> to vector<8x256xf32>
    %101 = vector.shape_cast %100 : vector<8x256xf32> to vector<1x8x256xf32>
    %102 = vector.broadcast %101 : vector<1x8x256xf32> to vector<3x8x256xf32>
    %103 = arith.mulf %102, %82 : vector<3x8x256xf32>
    %104 = arith.addf %79, %103 : vector<3x8x256xf32>
    %105 = arith.subf %1, %1 : vector<3x8x256xf32>
    %106 = math.absf %105 : vector<3x8x256xf32>
    %cst_48 = arith.constant dense<0.000000e+00> : vector<8x256xf32>
    %107 = vector.multi_reduction <add>, %106, %cst_48 [0] : vector<3x8x256xf32> to vector<8x256xf32>
    %cst_49 = arith.constant 0.000000e+00 : f32
    %108 = vector.broadcast %cst_49 : f32 to vector<8x256xf32>
    %109 = arith.subf %108, %6 : vector<8x256xf32>
    %110 = arith.mulf %107, %107 : vector<8x256xf32>
    %111 = arith.mulf %109, %110 : vector<8x256xf32>
    %112 = math.exp %111 : vector<8x256xf32>
    %c0_50 = arith.constant 0 : index
    %c4 = arith.constant 4 : index
    %c0_51 = arith.constant 0 : index
    %c0_52 = arith.constant 0 : index
    %113 = vector.load %arg2[%c0_50, %c4, %c0_51, %c0_52] : memref<1x23x8x256xf32, #tpu.memory_space<vmem>>, vector<1x1x8x256xf32>
    %114 = vector.shape_cast %113 : vector<1x1x8x256xf32> to vector<8x256xf32>
    %115 = arith.mulf %114, %112 : vector<8x256xf32>
    %116 = vector.shape_cast %115 : vector<8x256xf32> to vector<1x8x256xf32>
    %117 = vector.broadcast %116 : vector<1x8x256xf32> to vector<3x8x256xf32>
    %118 = arith.mulf %117, %1 : vector<3x8x256xf32>
    %119 = arith.addf %97, %118 : vector<3x8x256xf32>
    %120 = arith.addf %98, %115 : vector<8x256xf32>
    %c0_53 = arith.constant 0 : index
    %c13 = arith.constant 13 : index
    %c0_54 = arith.constant 0 : index
    %c0_55 = arith.constant 0 : index
    %121 = vector.load %arg2[%c0_53, %c13, %c0_54, %c0_55] : memref<1x23x8x256xf32, #tpu.memory_space<vmem>>, vector<1x1x8x256xf32>
    %122 = vector.shape_cast %121 : vector<1x1x8x256xf32> to vector<8x256xf32>
    %123 = vector.shape_cast %122 : vector<8x256xf32> to vector<1x8x256xf32>
    %124 = vector.broadcast %123 : vector<1x8x256xf32> to vector<3x8x256xf32>
    %125 = arith.mulf %124, %1 : vector<3x8x256xf32>
    %126 = arith.addf %104, %125 : vector<3x8x256xf32>
    %c255_i32_56 = arith.constant 255 : i32
    %127 = tpu.dynamic_rotate %80 by %c255_i32_56 dim 1 : vector<24x256xf32>, i32 -> vector<24x256xf32>
    %128 = vector.shape_cast %127 : vector<24x256xf32> to vector<3x8x256xf32>
    %129 = arith.subf %128, %1 : vector<3x8x256xf32>
    %130 = math.absf %129 : vector<3x8x256xf32>
    %cst_57 = arith.constant dense<0.000000e+00> : vector<8x256xf32>
    %131 = vector.multi_reduction <add>, %130, %cst_57 [0] : vector<3x8x256xf32> to vector<8x256xf32>
    %cst_58 = arith.constant 0.000000e+00 : f32
    %132 = vector.broadcast %cst_58 : f32 to vector<8x256xf32>
    %133 = arith.subf %132, %6 : vector<8x256xf32>
    %134 = arith.mulf %131, %131 : vector<8x256xf32>
    %135 = arith.mulf %133, %134 : vector<8x256xf32>
    %136 = math.exp %135 : vector<8x256xf32>
    %c0_59 = arith.constant 0 : index
    %c5 = arith.constant 5 : index
    %c0_60 = arith.constant 0 : index
    %c0_61 = arith.constant 0 : index
    %137 = vector.load %arg2[%c0_59, %c5, %c0_60, %c0_61] : memref<1x23x8x256xf32, #tpu.memory_space<vmem>>, vector<1x1x8x256xf32>
    %138 = vector.shape_cast %137 : vector<1x1x8x256xf32> to vector<8x256xf32>
    %139 = arith.mulf %138, %136 : vector<8x256xf32>
    %140 = vector.shape_cast %139 : vector<8x256xf32> to vector<1x8x256xf32>
    %141 = vector.broadcast %140 : vector<1x8x256xf32> to vector<3x8x256xf32>
    %142 = arith.mulf %141, %128 : vector<3x8x256xf32>
    %143 = arith.addf %119, %142 : vector<3x8x256xf32>
    %144 = arith.addf %120, %139 : vector<8x256xf32>
    %c0_62 = arith.constant 0 : index
    %c14 = arith.constant 14 : index
    %c0_63 = arith.constant 0 : index
    %c0_64 = arith.constant 0 : index
    %145 = vector.load %arg2[%c0_62, %c14, %c0_63, %c0_64] : memref<1x23x8x256xf32, #tpu.memory_space<vmem>>, vector<1x1x8x256xf32>
    %146 = vector.shape_cast %145 : vector<1x1x8x256xf32> to vector<8x256xf32>
    %147 = vector.shape_cast %146 : vector<8x256xf32> to vector<1x8x256xf32>
    %148 = vector.broadcast %147 : vector<1x8x256xf32> to vector<3x8x256xf32>
    %149 = arith.mulf %148, %128 : vector<3x8x256xf32>
    %150 = arith.addf %126, %149 : vector<3x8x256xf32>
    %c0_65 = arith.constant 0 : index
    %c0_66 = arith.constant 0 : index
    %c0_67 = arith.constant 0 : index
    %c2_68 = arith.constant 2 : index
    %c0_69 = arith.constant 0 : index
    %151 = vector.load %arg3[%c0_65, %c0_66, %c0_67, %c2_68, %c0_69] : memref<1x1x3x10x256xf32, #tpu.memory_space<vmem>>, vector<1x1x3x8x256xf32>
    %152 = vector.shape_cast %151 : vector<1x1x3x8x256xf32> to vector<3x8x256xf32>
    %153 = vector.shape_cast %152 : vector<3x8x256xf32> to vector<24x256xf32>
    %c1_i32_70 = arith.constant 1 : i32
    %154 = tpu.dynamic_rotate %153 by %c1_i32_70 dim 1 : vector<24x256xf32>, i32 -> vector<24x256xf32>
    %155 = vector.shape_cast %154 : vector<24x256xf32> to vector<3x8x256xf32>
    %156 = arith.subf %155, %1 : vector<3x8x256xf32>
    %157 = math.absf %156 : vector<3x8x256xf32>
    %cst_71 = arith.constant dense<0.000000e+00> : vector<8x256xf32>
    %158 = vector.multi_reduction <add>, %157, %cst_71 [0] : vector<3x8x256xf32> to vector<8x256xf32>
    %cst_72 = arith.constant 0.000000e+00 : f32
    %159 = vector.broadcast %cst_72 : f32 to vector<8x256xf32>
    %160 = arith.subf %159, %6 : vector<8x256xf32>
    %161 = arith.mulf %158, %158 : vector<8x256xf32>
    %162 = arith.mulf %160, %161 : vector<8x256xf32>
    %163 = math.exp %162 : vector<8x256xf32>
    %c0_73 = arith.constant 0 : index
    %c6 = arith.constant 6 : index
    %c0_74 = arith.constant 0 : index
    %c0_75 = arith.constant 0 : index
    %164 = vector.load %arg2[%c0_73, %c6, %c0_74, %c0_75] : memref<1x23x8x256xf32, #tpu.memory_space<vmem>>, vector<1x1x8x256xf32>
    %165 = vector.shape_cast %164 : vector<1x1x8x256xf32> to vector<8x256xf32>
    %166 = arith.mulf %165, %163 : vector<8x256xf32>
    %167 = vector.shape_cast %166 : vector<8x256xf32> to vector<1x8x256xf32>
    %168 = vector.broadcast %167 : vector<1x8x256xf32> to vector<3x8x256xf32>
    %169 = arith.mulf %168, %155 : vector<3x8x256xf32>
    %170 = arith.addf %143, %169 : vector<3x8x256xf32>
    %171 = arith.addf %144, %166 : vector<8x256xf32>
    %c0_76 = arith.constant 0 : index
    %c15 = arith.constant 15 : index
    %c0_77 = arith.constant 0 : index
    %c0_78 = arith.constant 0 : index
    %172 = vector.load %arg2[%c0_76, %c15, %c0_77, %c0_78] : memref<1x23x8x256xf32, #tpu.memory_space<vmem>>, vector<1x1x8x256xf32>
    %173 = vector.shape_cast %172 : vector<1x1x8x256xf32> to vector<8x256xf32>
    %174 = vector.shape_cast %173 : vector<8x256xf32> to vector<1x8x256xf32>
    %175 = vector.broadcast %174 : vector<1x8x256xf32> to vector<3x8x256xf32>
    %176 = arith.mulf %175, %155 : vector<3x8x256xf32>
    %177 = arith.addf %150, %176 : vector<3x8x256xf32>
    %178 = arith.subf %152, %1 : vector<3x8x256xf32>
    %179 = math.absf %178 : vector<3x8x256xf32>
    %cst_79 = arith.constant dense<0.000000e+00> : vector<8x256xf32>
    %180 = vector.multi_reduction <add>, %179, %cst_79 [0] : vector<3x8x256xf32> to vector<8x256xf32>
    %cst_80 = arith.constant 0.000000e+00 : f32
    %181 = vector.broadcast %cst_80 : f32 to vector<8x256xf32>
    %182 = arith.subf %181, %6 : vector<8x256xf32>
    %183 = arith.mulf %180, %180 : vector<8x256xf32>
    %184 = arith.mulf %182, %183 : vector<8x256xf32>
    %185 = math.exp %184 : vector<8x256xf32>
    %c0_81 = arith.constant 0 : index
    %c7 = arith.constant 7 : index
    %c0_82 = arith.constant 0 : index
    %c0_83 = arith.constant 0 : index
    %186 = vector.load %arg2[%c0_81, %c7, %c0_82, %c0_83] : memref<1x23x8x256xf32, #tpu.memory_space<vmem>>, vector<1x1x8x256xf32>
    %187 = vector.shape_cast %186 : vector<1x1x8x256xf32> to vector<8x256xf32>
    %188 = arith.mulf %187, %185 : vector<8x256xf32>
    %189 = vector.shape_cast %188 : vector<8x256xf32> to vector<1x8x256xf32>
    %190 = vector.broadcast %189 : vector<1x8x256xf32> to vector<3x8x256xf32>
    %191 = arith.mulf %190, %152 : vector<3x8x256xf32>
    %192 = arith.addf %170, %191 : vector<3x8x256xf32>
    %193 = arith.addf %171, %188 : vector<8x256xf32>
    %c0_84 = arith.constant 0 : index
    %c16 = arith.constant 16 : index
    %c0_85 = arith.constant 0 : index
    %c0_86 = arith.constant 0 : index
    %194 = vector.load %arg2[%c0_84, %c16, %c0_85, %c0_86] : memref<1x23x8x256xf32, #tpu.memory_space<vmem>>, vector<1x1x8x256xf32>
    %195 = vector.shape_cast %194 : vector<1x1x8x256xf32> to vector<8x256xf32>
    %196 = vector.shape_cast %195 : vector<8x256xf32> to vector<1x8x256xf32>
    %197 = vector.broadcast %196 : vector<1x8x256xf32> to vector<3x8x256xf32>
    %198 = arith.mulf %197, %152 : vector<3x8x256xf32>
    %199 = arith.addf %177, %198 : vector<3x8x256xf32>
    %c255_i32_87 = arith.constant 255 : i32
    %200 = tpu.dynamic_rotate %153 by %c255_i32_87 dim 1 : vector<24x256xf32>, i32 -> vector<24x256xf32>
    %201 = vector.shape_cast %200 : vector<24x256xf32> to vector<3x8x256xf32>
    %202 = arith.subf %201, %1 : vector<3x8x256xf32>
    %203 = math.absf %202 : vector<3x8x256xf32>
    %cst_88 = arith.constant dense<0.000000e+00> : vector<8x256xf32>
    %204 = vector.multi_reduction <add>, %203, %cst_88 [0] : vector<3x8x256xf32> to vector<8x256xf32>
    %cst_89 = arith.constant 0.000000e+00 : f32
    %205 = vector.broadcast %cst_89 : f32 to vector<8x256xf32>
    %206 = arith.subf %205, %6 : vector<8x256xf32>
    %207 = arith.mulf %204, %204 : vector<8x256xf32>
    %208 = arith.mulf %206, %207 : vector<8x256xf32>
    %209 = math.exp %208 : vector<8x256xf32>
    %c0_90 = arith.constant 0 : index
    %c8 = arith.constant 8 : index
    %c0_91 = arith.constant 0 : index
    %c0_92 = arith.constant 0 : index
    %210 = vector.load %arg2[%c0_90, %c8, %c0_91, %c0_92] : memref<1x23x8x256xf32, #tpu.memory_space<vmem>>, vector<1x1x8x256xf32>
    %211 = vector.shape_cast %210 : vector<1x1x8x256xf32> to vector<8x256xf32>
    %212 = arith.mulf %211, %209 : vector<8x256xf32>
    %213 = vector.shape_cast %212 : vector<8x256xf32> to vector<1x8x256xf32>
    %214 = vector.broadcast %213 : vector<1x8x256xf32> to vector<3x8x256xf32>
    %215 = arith.mulf %214, %201 : vector<3x8x256xf32>
    %216 = arith.addf %192, %215 : vector<3x8x256xf32>
    %217 = arith.addf %193, %212 : vector<8x256xf32>
    %c0_93 = arith.constant 0 : index
    %c17 = arith.constant 17 : index
    %c0_94 = arith.constant 0 : index
    %c0_95 = arith.constant 0 : index
    %218 = vector.load %arg2[%c0_93, %c17, %c0_94, %c0_95] : memref<1x23x8x256xf32, #tpu.memory_space<vmem>>, vector<1x1x8x256xf32>
    %219 = vector.shape_cast %218 : vector<1x1x8x256xf32> to vector<8x256xf32>
    %220 = vector.shape_cast %219 : vector<8x256xf32> to vector<1x8x256xf32>
    %221 = vector.broadcast %220 : vector<1x8x256xf32> to vector<3x8x256xf32>
    %222 = arith.mulf %221, %201 : vector<3x8x256xf32>
    %223 = arith.addf %199, %222 : vector<3x8x256xf32>
    %224 = tpu.reciprocal %217 {approx = true} : vector<8x256xf32> -> vector<8x256xf32>
    %225 = arith.mulf %217, %224 : vector<8x256xf32>
    %cst_96 = arith.constant 2.000000e+00 : f32
    %226 = vector.broadcast %cst_96 : f32 to vector<8x256xf32>
    %227 = arith.subf %226, %225 : vector<8x256xf32>
    %228 = arith.mulf %224, %227 : vector<8x256xf32>
    %229 = vector.shape_cast %228 : vector<8x256xf32> to vector<1x8x256xf32>
    %230 = vector.broadcast %229 : vector<1x8x256xf32> to vector<3x8x256xf32>
    %231 = arith.mulf %216, %230 : vector<3x8x256xf32>
    %232 = arith.subf %1, %223 : vector<3x8x256xf32>
    %233 = math.absf %232 : vector<3x8x256xf32>
    %c0_97 = arith.constant 0 : index
    %c22 = arith.constant 22 : index
    %c0_98 = arith.constant 0 : index
    %c0_99 = arith.constant 0 : index
    %234 = vector.load %arg2[%c0_97, %c22, %c0_98, %c0_99] : memref<1x23x8x256xf32, #tpu.memory_space<vmem>>, vector<1x1x8x256xf32>
    %235 = vector.shape_cast %234 : vector<1x1x8x256xf32> to vector<8x256xf32>
    %236 = vector.shape_cast %235 : vector<8x256xf32> to vector<1x8x256xf32>
    %237 = vector.broadcast %236 : vector<1x8x256xf32> to vector<3x8x256xf32>
    %238 = arith.addf %1, %237 : vector<3x8x256xf32>
    %cst_100 = arith.constant 9.99999974E-6 : f32
    %239 = vector.broadcast %cst_100 : f32 to vector<3x8x256xf32>
    %240 = arith.maximumf %238, %239 : vector<3x8x256xf32>
    %c0_101 = arith.constant 0 : index
    %c21 = arith.constant 21 : index
    %c0_102 = arith.constant 0 : index
    %c0_103 = arith.constant 0 : index
    %241 = vector.load %arg2[%c0_101, %c21, %c0_102, %c0_103] : memref<1x23x8x256xf32, #tpu.memory_space<vmem>>, vector<1x1x8x256xf32>
    %242 = vector.shape_cast %241 : vector<1x1x8x256xf32> to vector<8x256xf32>
    %243 = vector.shape_cast %242 : vector<8x256xf32> to vector<1x8x256xf32>
    %244 = vector.broadcast %243 : vector<1x8x256xf32> to vector<3x8x256xf32>
    %245 = arith.mulf %233, %244 : vector<3x8x256xf32>
    %246 = tpu.reciprocal %240 {approx = true} : vector<3x8x256xf32> -> vector<3x8x256xf32>
    %247 = arith.mulf %240, %246 : vector<3x8x256xf32>
    %cst_104 = arith.constant 2.000000e+00 : f32
    %248 = vector.broadcast %cst_104 : f32 to vector<3x8x256xf32>
    %249 = arith.subf %248, %247 : vector<3x8x256xf32>
    %250 = arith.mulf %246, %249 : vector<3x8x256xf32>
    %251 = arith.mulf %245, %250 : vector<3x8x256xf32>
    %cst_105 = arith.constant 1.000000e+01 : f32
    %252 = vector.broadcast %cst_105 : f32 to vector<3x8x256xf32>
    %253 = arith.minimumf %251, %252 : vector<3x8x256xf32>
    %c0_106 = arith.constant 0 : index
    %c20 = arith.constant 20 : index
    %c0_107 = arith.constant 0 : index
    %c0_108 = arith.constant 0 : index
    %254 = vector.load %arg2[%c0_106, %c20, %c0_107, %c0_108] : memref<1x23x8x256xf32, #tpu.memory_space<vmem>>, vector<1x1x8x256xf32>
    %255 = vector.shape_cast %254 : vector<1x1x8x256xf32> to vector<8x256xf32>
    %256 = vector.shape_cast %255 : vector<8x256xf32> to vector<1x8x256xf32>
    %257 = vector.broadcast %256 : vector<1x8x256xf32> to vector<3x8x256xf32>
    %258 = arith.mulf %253, %257 : vector<3x8x256xf32>
    %259 = arith.mulf %258, %258 : vector<3x8x256xf32>
    %cst_109 = arith.constant 0.000000e+00 : f32
    %260 = vector.broadcast %cst_109 : f32 to vector<3x8x256xf32>
    %261 = arith.subf %260, %259 : vector<3x8x256xf32>
    %262 = math.exp %261 : vector<3x8x256xf32>
    %cst_110 = arith.constant 1.000000e+00 : f32
    %263 = vector.broadcast %cst_110 : f32 to vector<3x8x256xf32>
    %264 = arith.subf %263, %262 : vector<3x8x256xf32>
    %265 = arith.mulf %264, %264 : vector<3x8x256xf32>
    %cst_111 = arith.constant 2.000000e-03 : f32
    %266 = vector.broadcast %cst_111 : f32 to vector<3x8x256xf32>
    %267 = arith.subf %233, %266 : vector<3x8x256xf32>
    %cst_112 = arith.constant 1.000000e+03 : f32
    %268 = vector.broadcast %cst_112 : f32 to vector<3x8x256xf32>
    %269 = arith.mulf %268, %267 : vector<3x8x256xf32>
    %270 = arith.negf %269 : vector<3x8x256xf32>
    %271 = math.exp %270 : vector<3x8x256xf32>
    %cst_113 = arith.constant 1.000000e+00 : f32
    %272 = vector.broadcast %cst_113 : f32 to vector<3x8x256xf32>
    %273 = arith.addf %272, %271 : vector<3x8x256xf32>
    %274 = arith.divf %272, %273 : vector<3x8x256xf32>
    %c0_114 = arith.constant 0 : index
    %c19 = arith.constant 19 : index
    %c0_115 = arith.constant 0 : index
    %c0_116 = arith.constant 0 : index
    %275 = vector.load %arg2[%c0_114, %c19, %c0_115, %c0_116] : memref<1x23x8x256xf32, #tpu.memory_space<vmem>>, vector<1x1x8x256xf32>
    %276 = vector.shape_cast %275 : vector<1x1x8x256xf32> to vector<8x256xf32>
    %277 = vector.shape_cast %276 : vector<8x256xf32> to vector<1x8x256xf32>
    %278 = vector.broadcast %277 : vector<1x8x256xf32> to vector<3x8x256xf32>
    %279 = arith.mulf %278, %232 : vector<3x8x256xf32>
    %280 = arith.mulf %279, %265 : vector<3x8x256xf32>
    %281 = arith.mulf %280, %274 : vector<3x8x256xf32>
    %282 = arith.addf %231, %281 : vector<3x8x256xf32>
    %cst_117 = arith.constant 9.99999974E-6 : f32
    %cst_118 = arith.constant 1.000000e+00 : f32
    %283 = vector.broadcast %cst_117 : f32 to vector<3x8x256xf32>
    %284 = arith.maximumf %283, %282 : vector<3x8x256xf32>
    %285 = vector.broadcast %cst_118 : f32 to vector<3x8x256xf32>
    %286 = arith.minimumf %285, %284 : vector<3x8x256xf32>
    %c0_119 = arith.constant 0 : index
    %c0_120 = arith.constant 0 : index
    %c0_121 = arith.constant 0 : index
    %c0_122 = arith.constant 0 : index
    %287 = vector.load %arg4[%c0_119, %c0_120, %c0_121, %c0_122] : memref<1x3x8x256xf32, #tpu.memory_space<vmem>>, vector<1x3x8x256xf32>
    %288 = vector.shape_cast %287 : vector<1x3x8x256xf32> to vector<3x8x256xf32>
    %289 = vector.shape_cast %286 : vector<3x8x256xf32> to vector<1x3x8x256xf32>
    tpu.vector_store %arg4[%c0_119, %c0_120, %c0_121, %c0_122], %289 {strides = array<i32>} : memref<1x3x8x256xf32, #tpu.memory_space<vmem>>, vector<1x3x8x256xf32>,
    %cst_123 = arith.constant dense<0.000000e+00> : vector<8x256xf32>
    %290 = vector.multi_reduction <add>, %253, %cst_123 [0] : vector<3x8x256xf32> to vector<8x256xf32>
    %c0_124 = arith.constant 0 : index
    %c0_125 = arith.constant 0 : index
    %c0_126 = arith.constant 0 : index
    %c0_127 = arith.constant 0 : index
    %291 = vector.load %arg5[%c0_124, %c0_125, %c0_126, %c0_127] : memref<1x1x8x256xf32, #tpu.memory_space<vmem>>, vector<1x1x8x256xf32>
    %292 = vector.shape_cast %291 : vector<1x1x8x256xf32> to vector<8x256xf32>
    %293 = vector.shape_cast %290 : vector<8x256xf32> to vector<1x1x8x256xf32>
    tpu.vector_store %arg5[%c0_124, %c0_125, %c0_126, %c0_127], %293 {strides = array<i32>} : memref<1x1x8x256xf32, #tpu.memory_space<vmem>>, vector<1x1x8x256xf32>,
    %cst_128 = arith.constant dense<0.000000e+00> : vector<8x256xf32>
    %294 = vector.multi_reduction <add>, %233, %cst_128 [0] : vector<3x8x256xf32> to vector<8x256xf32>
    %c0_129 = arith.constant 0 : index
    %c0_130 = arith.constant 0 : index
    %c0_131 = arith.constant 0 : index
    %c0_132 = arith.constant 0 : index
    %295 = vector.load %arg6[%c0_129, %c0_130, %c0_131, %c0_132] : memref<1x1x8x256xf32, #tpu.memory_space<vmem>>, vector<1x1x8x256xf32>
    %296 = vector.shape_cast %295 : vector<1x1x8x256xf32> to vector<8x256xf32>
    %297 = vector.shape_cast %294 : vector<8x256xf32> to vector<1x1x8x256xf32>
    tpu.vector_store %arg6[%c0_129, %c0_130, %c0_131, %c0_132], %297 {strides = array<i32>} : memref<1x1x8x256xf32, #tpu.memory_space<vmem>>, vector<1x1x8x256xf32>,
    return
  }
  func.func @transform_0(%arg0: i32, %arg1: i32) -> (i32, i32, i32, i32) {
    %c0_i32 = arith.constant 0 : i32
    %c0_i32_0 = arith.constant 0 : i32
    %c0_i32_1 = arith.constant 0 : i32
    %c0_i32_2 = arith.constant 0 : i32
    return %arg0, %c0_i32, %c0_i32_0, %c0_i32_1 : i32, i32, i32, i32
  }
  func.func @transform_1(%arg0: i32, %arg1: i32) -> (i32, i32, i32, i32, i32) {
    %c0_i32 = arith.constant 0 : i32
    %c0_i32_0 = arith.constant 0 : i32
    %c0_i32_1 = arith.constant 0 : i32
    %c0_i32_2 = arith.constant 0 : i32
    return %arg0, %arg1, %c0_i32, %c0_i32_0, %c0_i32_1 : i32, i32, i32, i32, i32
  }
  func.func @transform_2(%arg0: i32, %arg1: i32) -> (i32, i32, i32, i32) {
    %c0_i32 = arith.constant 0 : i32
    %c0_i32_0 = arith.constant 0 : i32
    %c0_i32_1 = arith.constant 0 : i32
    return %arg0, %c0_i32, %arg1, %c0_i32_0 : i32, i32, i32, i32
  }
  func.func @transform_3(%arg0: i32, %arg1: i32) -> (i32, i32, i32, i32) {
    %c0_i32 = arith.constant 0 : i32
    %c0_i32_0 = arith.constant 0 : i32
    %c0_i32_1 = arith.constant 0 : i32
    return %arg0, %arg1, %c0_i32, %c0_i32_0 : i32, i32, i32, i32
  }
  func.func @transform_4(%arg0: i32, %arg1: i32) -> (i32, i32, i32, i32) {
    %c0_i32 = arith.constant 0 : i32
    %c0_i32_0 = arith.constant 0 : i32
    %c0_i32_1 = arith.constant 0 : i32
    return %arg0, %arg1, %c0_i32, %c0_i32_0 : i32, i32, i32, i32
  }
}

</mosaic_0001>

<llo_original>
// kernel: denoising_sharpening.1
$region0: #{denoising_sharpening.1}
  #allocation0 [shape = 'u32[]', space=smem, size = 0x4, offset = 0x4, fixed_abs, tag = 'smem constant byte address 0x4 - core index']
  #allocation1 [shape = 'u32[144,128]{1,0:T(1,128)}', space=vmem, size = 0x12000, scoped, tag = 'internal scratch']
  %s0 = inlined_call_operand.vmem [shape: f32[1,23,8,256], index: 0, kind: input, shape index: {}]
  %s1 = inlined_call_operand.vmem [shape: f32[1,2,3,10,256], index: 1, kind: input, shape index: {}]
  %s2 = inlined_call_operand.vmem [shape: f32[1,3,16,256], index: 2, kind: output, shape index: {0}]
  %s3 = inlined_call_operand.vmem [shape: f32[1,2,8,256], index: 3, kind: output, shape index: {1}]
  %s4 = inlined_call_operand.vmem [shape: f32[1,2,8,256], index: 4, kind: output, shape index: {2}]
  %5 = xla_tuple %s2, %s3, %s4
  %s6 = sld [smem:[#allocation0]]
  $region76: #{denoising_sharpening.1} parent=0
    _
  %s8 = ssub.s32 1, %s6
  %s9 = scalar_select 0, %s8, %s6
  $region1: #{denoising_sharpening.1} parent=0
    #allocation2 [shape = 'u8[49152]{0}', space=vmem, size = 0xc000, scoped, tag = 'output window, operand 0']
    loop: start=0, step=1, limit=4
    $region2: #{denoising_sharpening.1} parent=1 // loop_pre_header
      _
    $region3: #{denoising_sharpening.1} parent=1 // loop_header
      %s11 = sphi 0, %s15
      %p12 = scmp.ge.s32.totalorder %s11, 4
      %s18 = sphi 0, %s30
      %s19 = sphi 0, %s26
      %s20 = sphi 0, %s18
      %s21 = sphi 0, %s19
      %s22 = sphi 0, %s20
      %s23 = sphi 0, %s21
      %s33 = sphi 0, %s35
      %s36 = sphi 0, %s33
      %s37 = sphi 0, %s36
      %s53 = sphi 0, %s37
      %s61 = sphi 0, %s63
      %s64 = sphi 0, %s61
      %s65 = sphi 0, %s64
      %s81 = sphi 0, %s65
      %s89 = sphi 0, %s91
      %s92 = sphi 0, %s89
      %s93 = sphi 0, %s92
      %s109 = sphi 0, %s93
      %s117 = sphi 0, %s119
      %s120 = sphi 0, %s117
      %s121 = sphi 0, %s120
      %s137 = sphi 0, %s121
      %s145 = sphi 0, %s147
      %s148 = sphi 0, %s145
      %s149 = sphi 0, %s148
      %s165 = sphi 0, %s149
    $region4: #{denoising_sharpening.1} parent=1 // loop_header_branch
      %14 = sbr.rel (%p12) target = $region8
    $region5: #{denoising_sharpening.1} parent=1 // loop_body
      %s16 = ssub.s32 %s11, 1
      %s17 = ssub.s32 %s11, 2
      %s24 = sadd.s32 1, %s19
      %p25 = scmp.ge.s32.totalorder %s24, 2
      %s26 = scalar_select %p25, 0, %s24
      %s27 = sadd.s32 1, %s18
      %s28 = scalar_select %p25, %s27, %s18
      %p29 = scmp.ge.s32.totalorder %s28, 1
      %s30 = scalar_select %p29, 0, %s28
      %s31 = ssub.s32 %s18, %s30
      %p32 = scmp.eq.s32.totalorder %s31, 0
      %s34 = sadd.s32 %s33, 1
      %s35 = scalar_select %p32, %s33, %s34
      %p38 = pneg %p32
      %p39 = scmp.eq.s32.totalorder %s11, 1
      %p40 = por %p38, %p39
      %p41 = scmp.ne.s32.totalorder %s33, %s36
      %p42 = scmp.eq.s32.totalorder %s11, 0
      %p43 = por %p41, %p42
      %p44 = scmp.ne.s32.totalorder %s33, %s36
      %p45 = scmp.eq.s32.totalorder %s16, 1
      %p46 = por %p44, %p45
      %p47 = scmp.ne.s32.totalorder %s36, %s37
      %p48 = scmp.eq.s32.totalorder %s16, 0
      %p49 = por %p47, %p48
      %p50 = scmp.ne.s32.totalorder %s36, %s37
      %p51 = scmp.eq.s32.totalorder %s17, 1
      %p52 = por %p50, %p51
      %p54 = scmp.ne.s32.totalorder %s37, %s53
      %p55 = scmp.eq.s32.totalorder %s17, 0
      %p56 = por %p54, %p55
      %s57 = ssub.s32 %s18, %s30
      %s58 = ssub.s32 %s19, %s26
      %s59 = sor.u32 %s57, %s58
      %p60 = scmp.eq.s32.totalorder %s59, 0
      %s62 = sadd.s32 %s61, 1
      %s63 = scalar_select %p60, %s61, %s62
      %p66 = pneg %p60
      %p67 = scmp.eq.s32.totalorder %s11, 1
      %p68 = por %p66, %p67
      %p69 = scmp.ne.s32.totalorder %s61, %s64
      %p70 = scmp.eq.s32.totalorder %s11, 0
      %p71 = por %p69, %p70
      %p72 = scmp.ne.s32.totalorder %s61, %s64
      %p73 = scmp.eq.s32.totalorder %s16, 1
      %p74 = por %p72, %p73
      %p75 = scmp.ne.s32.totalorder %s64, %s65
      %p76 = scmp.eq.s32.totalorder %s16, 0
      %p77 = por %p75, %p76
      %p78 = scmp.ne.s32.totalorder %s64, %s65
      %p79 = scmp.eq.s32.totalorder %s17, 1
      %p80 = por %p78, %p79
      %p82 = scmp.ne.s32.totalorder %s65, %s81
      %p83 = scmp.eq.s32.totalorder %s17, 0
      %p84 = por %p82, %p83
      %s85 = ssub.s32 %s18, %s30
      %s86 = ssub.s32 %s19, %s26
      %s87 = sor.u32 %s85, %s86
      %p88 = scmp.eq.s32.totalorder %s87, 0
      %s90 = sadd.s32 %s89, 1
      %s91 = scalar_select %p88, %s89, %s90
      %p94 = pneg %p88
      %p95 = scmp.eq.s32.totalorder %s11, 1
      %p96 = por %p94, %p95
      %p97 = scmp.ne.s32.totalorder %s89, %s92
      %p98 = scmp.eq.s32.totalorder %s11, 0
      %p99 = por %p97, %p98
      %p100 = scmp.ne.s32.totalorder %s89, %s92
      %p101 = scmp.eq.s32.totalorder %s16, 1
      %p102 = por %p100, %p101
      %p103 = scmp.ne.s32.totalorder %s92, %s93
      %p104 = scmp.eq.s32.totalorder %s16, 0
      %p105 = por %p103, %p104
      %p106 = scmp.ne.s32.totalorder %s92, %s93
      %p107 = scmp.eq.s32.totalorder %s17, 1
      %p108 = por %p106, %p107
      %p110 = scmp.ne.s32.totalorder %s93, %s109
      %p111 = scmp.eq.s32.totalorder %s17, 0
      %p112 = por %p110, %p111
      %s113 = ssub.s32 %s18, %s30
      %s114 = ssub.s32 %s19, %s26
      %s115 = sor.u32 %s113, %s114
      %p116 = scmp.eq.s32.totalorder %s115, 0
      %s118 = sadd.s32 %s117, 1
      %s119 = scalar_select %p116, %s117, %s118
      %p122 = pneg %p116
      %p123 = scmp.eq.s32.totalorder %s11, 1
      %p124 = por %p122, %p123
      %p125 = scmp.ne.s32.totalorder %s117, %s120
      %p126 = scmp.eq.s32.totalorder %s11, 0
      %p127 = por %p125, %p126
      %p128 = scmp.ne.s32.totalorder %s117, %s120
      %p129 = scmp.eq.s32.totalorder %s16, 1
      %p130 = por %p128, %p129
      %p131 = scmp.ne.s32.totalorder %s120, %s121
      %p132 = scmp.eq.s32.totalorder %s16, 0
      %p133 = por %p131, %p132
      %p134 = scmp.ne.s32.totalorder %s120, %s121
      %p135 = scmp.eq.s32.totalorder %s17, 1
      %p136 = por %p134, %p135
      %p138 = scmp.ne.s32.totalorder %s121, %s137
      %p139 = scmp.eq.s32.totalorder %s17, 0
      %p140 = por %p138, %p139
      %s141 = ssub.s32 %s18, %s30
      %s142 = ssub.s32 %s19, %s26
      %s143 = sor.u32 %s141, %s142
      %p144 = scmp.eq.s32.totalorder %s143, 0
      %s146 = sadd.s32 %s145, 1
      %s147 = scalar_select %p144, %s145, %s146
      %p150 = pneg %p144
      %p151 = scmp.eq.s32.totalorder %s11, 1
      %p152 = por %p150, %p151
      %p153 = scmp.ne.s32.totalorder %s145, %s148
      %p154 = scmp.eq.s32.totalorder %s11, 0
      %p155 = por %p153, %p154
      %p156 = scmp.ne.s32.totalorder %s145, %s148
      %p157 = scmp.eq.s32.totalorder %s16, 1
      %p158 = por %p156, %p157
      %p159 = scmp.ne.s32.totalorder %s148, %s149
      %p160 = scmp.eq.s32.totalorder %s16, 0
      %p161 = por %p159, %p160
      %p162 = scmp.ne.s32.totalorder %s148, %s149
      %p163 = scmp.eq.s32.totalorder %s17, 1
      %p164 = por %p162, %p163
      %p166 = scmp.ne.s32.totalorder %s149, %s165
      %p167 = scmp.eq.s32.totalorder %s17, 0
      %p168 = por %p166, %p167
      %p169 = scmp.le.s32.totalorder 1, %s11
      %p170 = scmp.lt.s32.totalorder %s11, 3
      %p171 = pnand %p169, %p170
      %p172 = pneg %p171
      // Predicated region
      $region9: #{denoising_sharpening.1} parent=5 // pred_check
        _
      $region10: #{denoising_sharpening.1} parent=5 // pred_check_branch
        %174 = sbr.rel (%p171) target = $region12
      $region11: #{denoising_sharpening.1} parent=5 // pred_region
        %s175 = ssub.s32 %s11, 1
        // Predicated region
        $region13: #{denoising_sharpening.1} parent=11 // pred_check
          %p176 = pneg %p49
        $region14: #{denoising_sharpening.1} parent=11 // pred_check_branch
          %178 = sbr.rel (%p176) target = $region16
        $region15: #{denoising_sharpening.1} parent=11 // pred_region
          %p179 = scmp.lt.s32.totalorder %s20, 0
          %s180 = scalar_select %p179, %s20, 0
          %s181 = smul.addr %s180, 46
          %s182 = smul.addr %s181, 8
          %s183 = scalar_lea.vmem %s0, %s182
        $region16: #{denoising_sharpening.1} parent=11 // pred_fallthru
          _
      $region12: #{denoising_sharpening.1} parent=5 // pred_fallthru
        _
      %p184 = scmp.lt.s32.totalorder %s11, 2
      // Predicated region
      $region17: #{denoising_sharpening.1} parent=5 // pred_check
        %p185 = pneg %p184
      $region18: #{denoising_sharpening.1} parent=5 // pred_check_branch
        %187 = sbr.rel (%p185) target = $region20
      $region19: #{denoising_sharpening.1} parent=5 // pred_region
        // Predicated region
        $region21: #{denoising_sharpening.1} parent=19 // pred_check
          %p188 = pneg %p71
        $region22: #{denoising_sharpening.1} parent=19 // pred_check_branch
          %190 = sbr.rel (%p188) target = $region24
        $region23: #{denoising_sharpening.1} parent=19 // pred_region
          %p191 = scmp.lt.s32.totalorder %s18, 0
          %s192 = scalar_select %p191, %s18, 0
          %p193 = scmp.lt.s32.totalorder %s19, 1
          %s194 = scalar_select %p193, %s19, 1
          %s195 = smul.addr %s194, 12
          %s196 = smul.addr %s192, 24
          %s197 = sadd.s32 %s195, %s196
          %s198 = smul.addr %s197, 8
          %s199 = scalar_lea.vmem %s1, %s198
        $region24: #{denoising_sharpening.1} parent=19 // pred_fallthru
          _
      $region20: #{denoising_sharpening.1} parent=5 // pred_fallthru
        _
      %p200 = scmp.le.s32.totalorder 1, %s11
      %p201 = scmp.lt.s32.totalorder %s11, 3
      %p202 = pnand %p200, %p201
      %p203 = pneg %p202
      // Predicated region
      $region25: #{denoising_sharpening.1} parent=5 // pred_check
        _
      $region26: #{denoising_sharpening.1} parent=5 // pred_check_branch
        %205 = sbr.rel (%p202) target = $region28
      $region27: #{denoising_sharpening.1} parent=5 // pred_region
        %s206 = ssub.s32 %s11, 1
        %p207 = scmp.lt.s32.totalorder %s20, 0
        %s208 = scalar_select %p207, %s20, 0
        %s209 = smul.addr %s208, 46
        %s210 = smul.addr %s209, 8
        %s211 = scalar_lea.vmem %s0, %s210
        %p212 = pneg %p49
        %p213 = pneg %p46
        %p214 = scmp.lt.s32.totalorder %s20, 0
        %s215 = scalar_select %p214, %s20, 0
        %p216 = scmp.lt.s32.totalorder %s21, 1
        %s217 = scalar_select %p216, %s21, 1
        %s218 = smul.addr %s217, 12
        %s219 = smul.addr %s215, 24
        %s220 = sadd.s32 %s218, %s219
        %s221 = smul.addr %s220, 8
        %s222 = scalar_lea.vmem %s1, %s221
        %p223 = pneg %p77
        %p224 = pneg %p74
        %p225 = pneg %p105
        %p226 = pneg %p102
        %s227 = sand.u32 %s92, 1
        %s228 = sand.u32 %s92, 1
        %s229 = smul.addr %s228, 48
        %s230 = scalar_lea.vmem [#allocation2], %s229
        %p231 = pneg %p133
        %p232 = pneg %p130
        %p233 = scmp.lt.s32.totalorder %s20, 0
        %s234 = scalar_select %p233, %s20, 0
        %p235 = scmp.lt.s32.totalorder %s21, 1
        %s236 = scalar_select %p235, %s21, 1
        %s237 = smul.addr %s236, 2
        %s238 = smul.addr %s234, 4
        %s239 = sadd.s32 %s237, %s238
        %s240 = smul.addr %s239, 8
        %s241 = scalar_lea.vmem %s3, %s240
        %p242 = pneg %p161
        %p243 = pneg %p158
        %p244 = scmp.lt.s32.totalorder %s20, 0
        %s245 = scalar_select %p244, %s20, 0
        %p246 = scmp.lt.s32.totalorder %s21, 1
        %s247 = scalar_select %p246, %s21, 1
        %s248 = smul.addr %s247, 2
        %s249 = smul.addr %s245, 4
        %s250 = sadd.s32 %s248, %s249
        %s251 = smul.addr %s250, 8
        %s252 = scalar_lea.vmem %s4, %s251
        %p253 = scmp.lt.s32.totalorder %s20, 0
        %s254 = scalar_select %p253, %s20, 0
        %s255 = smul.addr %s254, 46
        %s256 = smul.addr %s255, 8
        %s257 = scalar_lea.vmem %s0, %s256
        %p258 = scmp.lt.s32.totalorder %s20, 0
        %s259 = scalar_select %p258, %s20, 0
        %p260 = scmp.lt.s32.totalorder %s21, 1
        %s261 = scalar_select %p260, %s21, 1
        %s262 = smul.addr %s261, 12
        %s263 = smul.addr %s259, 24
        %s264 = sadd.s32 %s262, %s263
        %s265 = smul.addr %s264, 8
        %s266 = scalar_lea.vmem %s1, %s265
        %p267 = scmp.lt.s32.totalorder %s20, 0
        %s268 = scalar_select %p267, %s20, 0
        %p269 = scmp.lt.s32.totalorder %s21, 1
        %s270 = scalar_select %p269, %s21, 1
        %s271 = smul.addr %s270, 2
        %s272 = smul.addr %s268, 4
        %s273 = sadd.s32 %s271, %s272
        %s274 = smul.addr %s273, 8
        %s275 = scalar_lea.vmem %s3, %s274
        %p276 = scmp.lt.s32.totalorder %s20, 0
        %s277 = scalar_select %p276, %s20, 0
        %p278 = scmp.lt.s32.totalorder %s21, 1
        %s279 = scalar_select %p278, %s21, 1
        %s280 = smul.addr %s279, 2
        %s281 = smul.addr %s277, 4
        %s282 = sadd.s32 %s280, %s281
        %s283 = smul.addr %s282, 8
        %s284 = scalar_lea.vmem %s4, %s283
        %v285 = vld [vmem:[%s266] sm:$0xfe]
        %v286 = vld [vmem:[%s266 + $0x8] sm:$0xfe]
        %v287 = vld [vmem:[%s266 + $0x10] sm:$0x1]
        %v288 = vld [vmem:[%s266 + $0x18] sm:$0x1]
        %v289 = vld [vmem:[%s266 + $0x20] sm:$0xfe]
        %v290 = vld [vmem:[%s266 + $0x28] sm:$0xfe]
        %v291 = vld [vmem:[%s266 + $0x30] sm:$0x1]
        %v292 = vld [vmem:[%s266 + $0x38] sm:$0x1]
        %v293 = vld [vmem:[%s266 + $0x40] sm:$0xfe]
        %v294 = vld [vmem:[%s266 + $0x48] sm:$0xfe]
        %v295 = vld [vmem:[%s266 + $0x50] sm:$0x1]
        %v296 = vld [vmem:[%s266 + $0x58] sm:$0x1]
        %s297 = scalar_lea.vmem %s257, 288
        %v298 = vld [vmem:[%s297] sm:$0xff]
        %v299 = vld [vmem:[%s297 + $0x8] sm:$0xff]
        %v300 = vld [vmem:[%s266] sm:$0xff]
        %v301 = vld [vmem:[%s266 + $0x8] sm:$0xff]
        %v302 = vld [vmem:[%s266 + $0x20] sm:$0xff]
        %v303 = vld [vmem:[%s266 + $0x28] sm:$0xff]
        %v304 = vld [vmem:[%s266 + $0x40] sm:$0xff]
        %v305 = vld [vmem:[%s266 + $0x48] sm:$0xff]
        %306 = vrot.lane.b32.xlu0 %v300, 1
        %v307 = vpop.permute.xlu0 %306
        %308 = vrot.lane.b32.xlu0 %v302, 1
        %v309 = vpop.permute.xlu0 %308
        %310 = vrot.lane.b32.xlu0 %v304, 1
        %v311 = vpop.permute.xlu0 %310
        %312 = vrot.lane.b32.xlu0 %v301, 1
        %v313 = vpop.permute.xlu0 %312
        %314 = vrot.lane.b32.xlu0 %v303, 1
        %v315 = vpop.permute.xlu0 %314
        %316 = vrot.lane.b32.xlu0 %v305, 1
        %v317 = vpop.permute.xlu0 %316
        %v318 = vlaneseq
        %v319 = vand.u32 %v318, 127
        %vm320 = vcmp.lt.s32.totalorder %v319, 1
        %v321 = vsel %vm320, %v307, %v313
        %v322 = vsel %vm320, %v309, %v315
        %v323 = vsel %vm320, %v311, %v317
        %v324 = vsel %vm320, %v313, %v307
        %v325 = vsel %vm320, %v315, %v309
        %v326 = vsel %vm320, %v317, %v311
        %vm339 = vcmask 1046528
        %v340 = vrot.slane %v285, 1
        %v341 = vrot.slane %v287, 1
        %v342 = vsel %vm339, %v340, %v341
        %v343 = vrot.slane %v286, 1
        %v344 = vrot.slane %v288, 1
        %v345 = vsel %vm339, %v343, %v344
        %v346 = vrot.slane %v289, 1
        %v347 = vrot.slane %v291, 1
        %v348 = vsel %vm339, %v346, %v347
        %v349 = vrot.slane %v290, 1
        %v350 = vrot.slane %v292, 1
        %v351 = vsel %vm339, %v349, %v350
        %v352 = vrot.slane %v293, 1
        %v353 = vrot.slane %v295, 1
        %v354 = vsel %vm339, %v352, %v353
        %v355 = vrot.slane %v294, 1
        %v356 = vrot.slane %v296, 1
        %v357 = vsel %vm339, %v355, %v356
        %v364 = vsub.f32 %v324, %v342
        %v365 = vsub.f32 %v321, %v345
        %v366 = vsub.f32 %v325, %v348
        %v367 = vsub.f32 %v322, %v351
        %v368 = vsub.f32 %v326, %v354
        %v369 = vsub.f32 %v323, %v357
        %v370 = vand.u32 2147483647, %v364
        %v371 = vand.u32 2147483647, %v365
        %v372 = vand.u32 2147483647, %v366
        %v373 = vand.u32 2147483647, %v367
        %v374 = vand.u32 2147483647, %v368
        %v375 = vand.u32 2147483647, %v369
        %v376 = vadd.f32 %v370, %v372
        %v377 = vadd.f32 %v376, %v374
        %v378 = vadd.f32 %v371, %v373
        %v379 = vadd.f32 %v378, %v375
        %v380 = vsub.f32 0.0, %v298
        %v381 = vsub.f32 0.0, %v299
        %v382 = vmul.f32 %v377, %v377
        %v383 = vmul.f32 %v379, %v379
        %v384 = vmul.f32 %v380, %v382
        %v385 = vmul.f32 %v381, %v383
        %v386 = vmul.f32 %v384, 1.442695
        %v387 = vpow.pop %v386
        %v388 = vmul.f32 %v385, 1.442695
        %v389 = vpow.pop %v388
        %v390 = vld [vmem:[%s257] sm:$0xff]
        %v391 = vld [vmem:[%s257 + $0x8] sm:$0xff]
        %v392 = vmul.f32 %v390, %v387
        %v393 = vmul.f32 %v391, %v389
        %v394 = vmul.f32 %v392, %v324
        %v395 = vmul.f32 %v393, %v321
        %v396 = vmul.f32 %v392, %v325
        %v397 = vmul.f32 %v393, %v322
        %v398 = vmul.f32 %v392, %v326
        %v399 = vmul.f32 %v393, %v323
        %v400 = vadd.f32 %v394, 0.0
        %v401 = vadd.f32 %v395, 0.0
        %v402 = vadd.f32 %v396, 0.0
        %v403 = vadd.f32 %v397, 0.0
        %v404 = vadd.f32 %v398, 0.0
        %v405 = vadd.f32 %v399, 0.0
        %v406 = vadd.f32 %v392, 0.0
        %v407 = vadd.f32 %v393, 0.0
        %s408 = scalar_lea.vmem %s257, 144
        %v409 = vld [vmem:[%s408] sm:$0xff]
        %v410 = vld [vmem:[%s408 + $0x8] sm:$0xff]
        %v411 = vmul.f32 %v409, %v324
        %v412 = vmul.f32 %v410, %v321
        %v413 = vmul.f32 %v409, %v325
        %v414 = vmul.f32 %v410, %v322
        %v415 = vmul.f32 %v409, %v326
        %v416 = vmul.f32 %v410, %v323
        %v417 = vadd.f32 %v411, 0.0
        %v418 = vadd.f32 %v412, 0.0
        %v419 = vadd.f32 %v413, 0.0
        %v420 = vadd.f32 %v414, 0.0
        %v421 = vadd.f32 %v415, 0.0
        %v422 = vadd.f32 %v416, 0.0
        %v423 = vsub.f32 %v300, %v342
        %v424 = vsub.f32 %v301, %v345
        %v425 = vsub.f32 %v302, %v348
        %v426 = vsub.f32 %v303, %v351
        %v427 = vsub.f32 %v304, %v354
        %v428 = vsub.f32 %v305, %v357
        %v429 = vand.u32 2147483647, %v423
        %v430 = vand.u32 2147483647, %v424
        %v431 = vand.u32 2147483647, %v425
        %v432 = vand.u32 2147483647, %v426
        %v433 = vand.u32 2147483647, %v427
        %v434 = vand.u32 2147483647, %v428
        %v435 = vadd.f32 %v429, %v431
        %v436 = vadd.f32 %v435, %v433
        %v437 = vadd.f32 %v430, %v432
        %v438 = vadd.f32 %v437, %v434
        %v439 = vmul.f32 %v436, %v436
        %v440 = vmul.f32 %v438, %v438
        %v441 = vmul.f32 %v380, %v439
        %v442 = vmul.f32 %v381, %v440
        %v443 = vmul.f32 %v441, 1.442695
        %v444 = vpow.pop %v443
        %v445 = vmul.f32 %v442, 1.442695
        %v446 = vpow.pop %v445
        %s447 = scalar_lea.vmem %s257, 16
        %v448 = vld [vmem:[%s447] sm:$0xff]
        %v449 = vld [vmem:[%s447 + $0x8] sm:$0xff]
        %v450 = vmul.f32 %v448, %v444
        %v451 = vmul.f32 %v449, %v446
        %v452 = vmul.f32 %v450, %v300
        %v453 = vmul.f32 %v451, %v301
        %v454 = vmul.f32 %v450, %v302
        %v455 = vmul.f32 %v451, %v303
        %v456 = vmul.f32 %v450, %v304
        %v457 = vmul.f32 %v451, %v305
        %v458 = vadd.f32 %v400, %v452
        %v459 = vadd.f32 %v401, %v453
        %v460 = vadd.f32 %v402, %v454
        %v461 = vadd.f32 %v403, %v455
        %v462 = vadd.f32 %v404, %v456
        %v463 = vadd.f32 %v405, %v457
        %v464 = vadd.f32 %v406, %v450
        %v465 = vadd.f32 %v407, %v451
        %s466 = scalar_lea.vmem %s257, 160
        %v467 = vld [vmem:[%s466] sm:$0xff]
        %v468 = vld [vmem:[%s466 + $0x8] sm:$0xff]
        %v469 = vmul.f32 %v467, %v300
        %v470 = vmul.f32 %v468, %v301
        %v471 = vmul.f32 %v467, %v302
        %v472 = vmul.f32 %v468, %v303
        %v473 = vmul.f32 %v467, %v304
        %v474 = vmul.f32 %v468, %v305
        %v475 = vadd.f32 %v417, %v469
        %v476 = vadd.f32 %v418, %v470
        %v477 = vadd.f32 %v419, %v471
        %v478 = vadd.f32 %v420, %v472
        %v479 = vadd.f32 %v421, %v473
        %v480 = vadd.f32 %v422, %v474
        %481 = vrot.lane.b32.xlu0 %v300, 127
        %v482 = vpop.permute.xlu0 %481
        %483 = vrot.lane.b32.xlu0 %v302, 127
        %v484 = vpop.permute.xlu0 %483
        %485 = vrot.lane.b32.xlu0 %v304, 127
        %v486 = vpop.permute.xlu0 %485
        %487 = vrot.lane.b32.xlu0 %v301, 127
        %v488 = vpop.permute.xlu0 %487
        %489 = vrot.lane.b32.xlu0 %v303, 127
        %v490 = vpop.permute.xlu0 %489
        %491 = vrot.lane.b32.xlu0 %v305, 127
        %v492 = vpop.permute.xlu0 %491
        %vm493 = vcmp.lt.s32.totalorder %v319, 127
        %v494 = vsel %vm493, %v482, %v488
        %v495 = vsel %vm493, %v484, %v490
        %v496 = vsel %vm493, %v486, %v492
        %v497 = vsel %vm493, %v488, %v482
        %v498 = vsel %vm493, %v490, %v484
        %v499 = vsel %vm493, %v492, %v486
        %v500 = vsub.f32 %v494, %v342
        %v501 = vsub.f32 %v497, %v345
        %v502 = vsub.f32 %v495, %v348
        %v503 = vsub.f32 %v498, %v351
        %v504 = vsub.f32 %v496, %v354
        %v505 = vsub.f32 %v499, %v357
        %v506 = vand.u32 2147483647, %v500
        %v507 = vand.u32 2147483647, %v501
        %v508 = vand.u32 2147483647, %v502
        %v509 = vand.u32 2147483647, %v503
        %v510 = vand.u32 2147483647, %v504
        %v511 = vand.u32 2147483647, %v505
        %v512 = vadd.f32 %v506, %v508
        %v513 = vadd.f32 %v512, %v510
        %v514 = vadd.f32 %v507, %v509
        %v515 = vadd.f32 %v514, %v511
        %v516 = vmul.f32 %v513, %v513
        %v517 = vmul.f32 %v515, %v515
        %v518 = vmul.f32 %v380, %v516
        %v519 = vmul.f32 %v381, %v517
        %v520 = vmul.f32 %v518, 1.442695
        %v521 = vpow.pop %v520
        %v522 = vmul.f32 %v519, 1.442695
        %v523 = vpow.pop %v522
        %s524 = scalar_lea.vmem %s257, 32
        %v525 = vld [vmem:[%s524] sm:$0xff]
        %v526 = vld [vmem:[%s524 + $0x8] sm:$0xff]
        %v527 = vmul.f32 %v525, %v521
        %v528 = vmul.f32 %v526, %v523
        %v529 = vmul.f32 %v527, %v494
        %v530 = vmul.f32 %v528, %v497
        %v531 = vmul.f32 %v527, %v495
        %v532 = vmul.f32 %v528, %v498
        %v533 = vmul.f32 %v527, %v496
        %v534 = vmul.f32 %v528, %v499
        %v535 = vadd.f32 %v458, %v529
        %v536 = vadd.f32 %v459, %v530
        %v537 = vadd.f32 %v460, %v531
        %v538 = vadd.f32 %v461, %v532
        %v539 = vadd.f32 %v462, %v533
        %v540 = vadd.f32 %v463, %v534
        %v541 = vadd.f32 %v464, %v527
        %v542 = vadd.f32 %v465, %v528
        %s543 = scalar_lea.vmem %s257, 176
        %v544 = vld [vmem:[%s543] sm:$0xff]
        %v545 = vld [vmem:[%s543 + $0x8] sm:$0xff]
        %v546 = vmul.f32 %v544, %v494
        %v547 = vmul.f32 %v545, %v497
        %v548 = vmul.f32 %v544, %v495
        %v549 = vmul.f32 %v545, %v498
        %v550 = vmul.f32 %v544, %v496
        %v551 = vmul.f32 %v545, %v499
        %v552 = vadd.f32 %v475, %v546
        %v553 = vadd.f32 %v476, %v547
        %v554 = vadd.f32 %v477, %v548
        %v555 = vadd.f32 %v478, %v549
        %v556 = vadd.f32 %v479, %v550
        %v557 = vadd.f32 %v480, %v551
        %558 = vrot.lane.b32.xlu0 %v342, 1
        %v559 = vpop.permute.xlu0 %558
        %560 = vrot.lane.b32.xlu0 %v348, 1
        %v561 = vpop.permute.xlu0 %560
        %562 = vrot.lane.b32.xlu0 %v354, 1
        %v563 = vpop.permute.xlu0 %562
        %564 = vrot.lane.b32.xlu0 %v345, 1
        %v565 = vpop.permute.xlu0 %564
        %566 = vrot.lane.b32.xlu0 %v351, 1
        %v567 = vpop.permute.xlu0 %566
        %568 = vrot.lane.b32.xlu0 %v357, 1
        %v569 = vpop.permute.xlu0 %568
        %v570 = vsel %vm320, %v559, %v565
        %v571 = vsel %vm320, %v561, %v567
        %v572 = vsel %vm320, %v563, %v569
        %v573 = vsel %vm320, %v565, %v559
        %v574 = vsel %vm320, %v567, %v561
        %v575 = vsel %vm320, %v569, %v563
        %v576 = vsub.f32 %v573, %v342
        %v577 = vsub.f32 %v570, %v345
        %v578 = vsub.f32 %v574, %v348
        %v579 = vsub.f32 %v571, %v351
        %v580 = vsub.f32 %v575, %v354
        %v581 = vsub.f32 %v572, %v357
        %v582 = vand.u32 2147483647, %v576
        %v583 = vand.u32 2147483647, %v577
        %v584 = vand.u32 2147483647, %v578
        %v585 = vand.u32 2147483647, %v579
        %v586 = vand.u32 2147483647, %v580
        %v587 = vand.u32 2147483647, %v581
        %v588 = vadd.f32 %v582, %v584
        %v589 = vadd.f32 %v588, %v586
        %v590 = vadd.f32 %v583, %v585
        %v591 = vadd.f32 %v590, %v587
        %v592 = vmul.f32 %v589, %v589
        %v593 = vmul.f32 %v591, %v591
        %v594 = vmul.f32 %v380, %v592
        %v595 = vmul.f32 %v381, %v593
        %v596 = vmul.f32 %v594, 1.442695
        %v597 = vpow.pop %v596
        %v598 = vmul.f32 %v595, 1.442695
        %v599 = vpow.pop %v598
        %s600 = scalar_lea.vmem %s257, 48
        %v601 = vld [vmem:[%s600] sm:$0xff]
        %v602 = vld [vmem:[%s600 + $0x8] sm:$0xff]
        %v603 = vmul.f32 %v601, %v597
        %v604 = vmul.f32 %v602, %v599
        %v605 = vmul.f32 %v603, %v573
        %v606 = vmul.f32 %v604, %v570
        %v607 = vmul.f32 %v603, %v574
        %v608 = vmul.f32 %v604, %v571
        %v609 = vmul.f32 %v603, %v575
        %v610 = vmul.f32 %v604, %v572
        %v611 = vadd.f32 %v535, %v605
        %v612 = vadd.f32 %v536, %v606
        %v613 = vadd.f32 %v537, %v607
        %v614 = vadd.f32 %v538, %v608
        %v615 = vadd.f32 %v539, %v609
        %v616 = vadd.f32 %v540, %v610
        %v617 = vadd.f32 %v541, %v603
        %v618 = vadd.f32 %v542, %v604
        %s619 = scalar_lea.vmem %s257, 192
        %v620 = vld [vmem:[%s619] sm:$0xff]
        %v621 = vld [vmem:[%s619 + $0x8] sm:$0xff]
        %v622 = vmul.f32 %v620, %v573
        %v623 = vmul.f32 %v621, %v570
        %v624 = vmul.f32 %v620, %v574
        %v625 = vmul.f32 %v621, %v571
        %v626 = vmul.f32 %v620, %v575
        %v627 = vmul.f32 %v621, %v572
        %v628 = vadd.f32 %v552, %v622
        %v629 = vadd.f32 %v553, %v623
        %v630 = vadd.f32 %v554, %v624
        %v631 = vadd.f32 %v555, %v625
        %v632 = vadd.f32 %v556, %v626
        %v633 = vadd.f32 %v557, %v627
        %v634 = vsub.f32 %v285, %v285
        %v635 = vsub.f32 %v286, %v286
        %v636 = vsub.f32 %v287, %v287
        %v637 = vsub.f32 %v288, %v288
        %v638 = vsub.f32 %v289, %v289
        %v639 = vsub.f32 %v290, %v290
        %v640 = vsub.f32 %v291, %v291
        %v641 = vsub.f32 %v292, %v292
        %v642 = vsub.f32 %v293, %v293
        %v643 = vsub.f32 %v294, %v294
        %v644 = vsub.f32 %v295, %v295
        %v645 = vsub.f32 %v296, %v296
        %v646 = vand.u32 2147483647, %v634
        %v647 = vand.u32 2147483647, %v635
        %v648 = vand.u32 2147483647, %v636
        %v649 = vand.u32 2147483647, %v637
        %v650 = vand.u32 2147483647, %v638
        %v651 = vand.u32 2147483647, %v639
        %v652 = vand.u32 2147483647, %v640
        %v653 = vand.u32 2147483647, %v641
        %v654 = vand.u32 2147483647, %v642
        %v655 = vand.u32 2147483647, %v643
        %v656 = vand.u32 2147483647, %v644
        %v657 = vand.u32 2147483647, %v645
        %vm658 = vcmask 1047553
        %v659 = vsel %vm658, %v646, 0.0
        %v660 = vsel %vm658, %v650, 0.0
        %v661 = vadd.f32 %v659, %v660
        %v662 = vsel %vm658, %v654, 0.0
        %v663 = vadd.f32 %v661, %v662
        %v664 = vsel %vm658, %v647, 0.0
        %v665 = vsel %vm658, %v651, 0.0
        %v666 = vadd.f32 %v664, %v665
        %v667 = vsel %vm658, %v655, 0.0
        %v668 = vadd.f32 %v666, %v667
        %vm669 = vcmask 1040384
        %v670 = vsel %vm669, %v648, 0.0
        %v671 = vsel %vm669, %v652, 0.0
        %v672 = vadd.f32 %v670, %v671
        %v673 = vsel %vm669, %v656, 0.0
        %v674 = vadd.f32 %v672, %v673
        %v675 = vsel %vm669, %v649, 0.0
        %v676 = vsel %vm669, %v653, 0.0
        %v677 = vadd.f32 %v675, %v676
        %v678 = vsel %vm669, %v657, 0.0
        %v679 = vadd.f32 %v677, %v678
        %v680 = vmul.f32 %v663, %v663
        %v681 = vmul.f32 %v668, %v668
        %v682 = vmul.f32 %v674, %v674
        %v683 = vmul.f32 %v679, %v679
        %v688 = vrot.slane %v680, 1
        %v689 = vrot.slane %v682, 1
        %v690 = vsel %vm339, %v688, %v689
        %v691 = vrot.slane %v681, 1
        %v692 = vrot.slane %v683, 1
        %v693 = vsel %vm339, %v691, %v692
        %v696 = vmul.f32 %v380, %v690
        %v697 = vmul.f32 %v381, %v693
        %v698 = vmul.f32 %v696, 1.442695
        %v699 = vpow.pop %v698
        %v700 = vmul.f32 %v697, 1.442695
        %v701 = vpow.pop %v700
        %s702 = scalar_lea.vmem %s257, 64
        %v703 = vld [vmem:[%s702] sm:$0xff]
        %v704 = vld [vmem:[%s702 + $0x8] sm:$0xff]
        %v705 = vmul.f32 %v703, %v699
        %v706 = vmul.f32 %v704, %v701
        %v707 = vmul.f32 %v705, %v342
        %v708 = vmul.f32 %v706, %v345
        %v709 = vmul.f32 %v705, %v348
        %v710 = vmul.f32 %v706, %v351
        %v711 = vmul.f32 %v705, %v354
        %v712 = vmul.f32 %v706, %v357
        %v713 = vadd.f32 %v611, %v707
        %v714 = vadd.f32 %v612, %v708
        %v715 = vadd.f32 %v613, %v709
        %v716 = vadd.f32 %v614, %v710
        %v717 = vadd.f32 %v615, %v711
        %v718 = vadd.f32 %v616, %v712
        %v719 = vadd.f32 %v617, %v705
        %v720 = vadd.f32 %v618, %v706
        %s721 = scalar_lea.vmem %s257, 208
        %v722 = vld [vmem:[%s721] sm:$0xff]
        %v723 = vld [vmem:[%s721 + $0x8] sm:$0xff]
        %v724 = vmul.f32 %v722, %v342
        %v725 = vmul.f32 %v723, %v345
        %v726 = vmul.f32 %v722, %v348
        %v727 = vmul.f32 %v723, %v351
        %v728 = vmul.f32 %v722, %v354
        %v729 = vmul.f32 %v723, %v357
        %v730 = vadd.f32 %v628, %v724
        %v731 = vadd.f32 %v629, %v725
        %v732 = vadd.f32 %v630, %v726
        %v733 = vadd.f32 %v631, %v727
        %v734 = vadd.f32 %v632, %v728
        %v735 = vadd.f32 %v633, %v729
        %736 = vrot.lane.b32.xlu0 %v342, 127
        %v737 = vpop.permute.xlu0 %736
        %738 = vrot.lane.b32.xlu0 %v348, 127
        %v739 = vpop.permute.xlu0 %738
        %740 = vrot.lane.b32.xlu0 %v354, 127
        %v741 = vpop.permute.xlu0 %740
        %742 = vrot.lane.b32.xlu0 %v345, 127
        %v743 = vpop.permute.xlu0 %742
        %744 = vrot.lane.b32.xlu0 %v351, 127
        %v745 = vpop.permute.xlu0 %744
        %746 = vrot.lane.b32.xlu0 %v357, 127
        %v747 = vpop.permute.xlu0 %746
        %v748 = vsel %vm493, %v737, %v743
        %v749 = vsel %vm493, %v739, %v745
        %v750 = vsel %vm493, %v741, %v747
        %v751 = vsel %vm493, %v743, %v737
        %v752 = vsel %vm493, %v745, %v739
        %v753 = vsel %vm493, %v747, %v741
        %v754 = vsub.f32 %v748, %v342
        %v755 = vsub.f32 %v751, %v345
        %v756 = vsub.f32 %v749, %v348
        %v757 = vsub.f32 %v752, %v351
        %v758 = vsub.f32 %v750, %v354
        %v759 = vsub.f32 %v753, %v357
        %v760 = vand.u32 2147483647, %v754
        %v761 = vand.u32 2147483647, %v755
        %v762 = vand.u32 2147483647, %v756
        %v763 = vand.u32 2147483647, %v757
        %v764 = vand.u32 2147483647, %v758
        %v765 = vand.u32 2147483647, %v759
        %v766 = vadd.f32 %v760, %v762
        %v767 = vadd.f32 %v766, %v764
        %v768 = vadd.f32 %v761, %v763
        %v769 = vadd.f32 %v768, %v765
        %v770 = vmul.f32 %v767, %v767
        %v771 = vmul.f32 %v769, %v769
        %v772 = vmul.f32 %v380, %v770
        %v773 = vmul.f32 %v381, %v771
        %v774 = vmul.f32 %v772, 1.442695
        %v775 = vpow.pop %v774
        %v776 = vmul.f32 %v773, 1.442695
        %v777 = vpow.pop %v776
        %s778 = scalar_lea.vmem %s257, 80
        %v779 = vld [vmem:[%s778] sm:$0xff]
        %v780 = vld [vmem:[%s778 + $0x8] sm:$0xff]
        %v781 = vmul.f32 %v779, %v775
        %v782 = vmul.f32 %v780, %v777
        %v783 = vmul.f32 %v781, %v748
        %v784 = vmul.f32 %v782, %v751
        %v785 = vmul.f32 %v781, %v749
        %v786 = vmul.f32 %v782, %v752
        %v787 = vmul.f32 %v781, %v750
        %v788 = vmul.f32 %v782, %v753
        %v789 = vadd.f32 %v713, %v783
        %v790 = vadd.f32 %v714, %v784
        %v791 = vadd.f32 %v715, %v785
        %v792 = vadd.f32 %v716, %v786
        %v793 = vadd.f32 %v717, %v787
        %v794 = vadd.f32 %v718, %v788
        %v795 = vadd.f32 %v719, %v781
        %v796 = vadd.f32 %v720, %v782
        %s797 = scalar_lea.vmem %s257, 224
        %v798 = vld [vmem:[%s797] sm:$0xff]
        %v799 = vld [vmem:[%s797 + $0x8] sm:$0xff]
        %v800 = vmul.f32 %v798, %v748
        %v801 = vmul.f32 %v799, %v751
        %v802 = vmul.f32 %v798, %v749
        %v803 = vmul.f32 %v799, %v752
        %v804 = vmul.f32 %v798, %v750
        %v805 = vmul.f32 %v799, %v753
        %v806 = vadd.f32 %v730, %v800
        %v807 = vadd.f32 %v731, %v801
        %v808 = vadd.f32 %v732, %v802
        %v809 = vadd.f32 %v733, %v803
        %v810 = vadd.f32 %v734, %v804
        %v811 = vadd.f32 %v735, %v805
        %v812 = vld [vmem:[%s266] sm:$0xfc]
        %v813 = vld [vmem:[%s266 + $0x8] sm:$0xfc]
        %v814 = vld [vmem:[%s266 + $0x10] sm:$0x3]
        %v815 = vld [vmem:[%s266 + $0x18] sm:$0x3]
        %v816 = vld [vmem:[%s266 + $0x20] sm:$0xfc]
        %v817 = vld [vmem:[%s266 + $0x28] sm:$0xfc]
        %v818 = vld [vmem:[%s266 + $0x30] sm:$0x3]
        %v819 = vld [vmem:[%s266 + $0x38] sm:$0x3]
        %v820 = vld [vmem:[%s266 + $0x40] sm:$0xfc]
        %v821 = vld [vmem:[%s266 + $0x48] sm:$0xfc]
        %v822 = vld [vmem:[%s266 + $0x50] sm:$0x3]
        %v823 = vld [vmem:[%s266 + $0x58] sm:$0x3]
        %vm836 = vcmask 1045504
        %v837 = vrot.slane %v812, 2
        %v838 = vrot.slane %v814, 2
        %v839 = vsel %vm836, %v837, %v838
        %v840 = vrot.slane %v813, 2
        %v841 = vrot.slane %v815, 2
        %v842 = vsel %vm836, %v840, %v841
        %v843 = vrot.slane %v816, 2
        %v844 = vrot.slane %v818, 2
        %v845 = vsel %vm836, %v843, %v844
        %v846 = vrot.slane %v817, 2
        %v847 = vrot.slane %v819, 2
        %v848 = vsel %vm836, %v846, %v847
        %v849 = vrot.slane %v820, 2
        %v850 = vrot.slane %v822, 2
        %v851 = vsel %vm836, %v849, %v850
        %v852 = vrot.slane %v821, 2
        %v853 = vrot.slane %v823, 2
        %v854 = vsel %vm836, %v852, %v853
        %861 = vrot.lane.b32.xlu0 %v839, 1
        %v862 = vpop.permute.xlu0 %861
        %863 = vrot.lane.b32.xlu0 %v845, 1
        %v864 = vpop.permute.xlu0 %863
        %865 = vrot.lane.b32.xlu0 %v851, 1
        %v866 = vpop.permute.xlu0 %865
        %867 = vrot.lane.b32.xlu0 %v842, 1
        %v868 = vpop.permute.xlu0 %867
        %869 = vrot.lane.b32.xlu0 %v848, 1
        %v870 = vpop.permute.xlu0 %869
        %871 = vrot.lane.b32.xlu0 %v854, 1
        %v872 = vpop.permute.xlu0 %871
        %v873 = vsel %vm320, %v862, %v868
        %v874 = vsel %vm320, %v864, %v870
        %v875 = vsel %vm320, %v866, %v872
        %v876 = vsel %vm320, %v868, %v862
        %v877 = vsel %vm320, %v870, %v864
        %v878 = vsel %vm320, %v872, %v866
        %v879 = vsub.f32 %v876, %v342
        %v880 = vsub.f32 %v873, %v345
        %v881 = vsub.f32 %v877, %v348
        %v882 = vsub.f32 %v874, %v351
        %v883 = vsub.f32 %v878, %v354
        %v884 = vsub.f32 %v875, %v357
        %v885 = vand.u32 2147483647, %v879
        %v886 = vand.u32 2147483647, %v880
        %v887 = vand.u32 2147483647, %v881
        %v888 = vand.u32 2147483647, %v882
        %v889 = vand.u32 2147483647, %v883
        %v890 = vand.u32 2147483647, %v884
        %v891 = vadd.f32 %v885, %v887
        %v892 = vadd.f32 %v891, %v889
        %v893 = vadd.f32 %v886, %v888
        %v894 = vadd.f32 %v893, %v890
        %v895 = vmul.f32 %v892, %v892
        %v896 = vmul.f32 %v894, %v894
        %v897 = vmul.f32 %v380, %v895
        %v898 = vmul.f32 %v381, %v896
        %v899 = vmul.f32 %v897, 1.442695
        %v900 = vpow.pop %v899
        %v901 = vmul.f32 %v898, 1.442695
        %v902 = vpow.pop %v901
        %s903 = scalar_lea.vmem %s257, 96
        %v904 = vld [vmem:[%s903] sm:$0xff]
        %v905 = vld [vmem:[%s903 + $0x8] sm:$0xff]
        %v906 = vmul.f32 %v904, %v900
        %v907 = vmul.f32 %v905, %v902
        %v908 = vmul.f32 %v906, %v876
        %v909 = vmul.f32 %v907, %v873
        %v910 = vmul.f32 %v906, %v877
        %v911 = vmul.f32 %v907, %v874
        %v912 = vmul.f32 %v906, %v878
        %v913 = vmul.f32 %v907, %v875
        %v914 = vadd.f32 %v789, %v908
        %v915 = vadd.f32 %v790, %v909
        %v916 = vadd.f32 %v791, %v910
        %v917 = vadd.f32 %v792, %v911
        %v918 = vadd.f32 %v793, %v912
        %v919 = vadd.f32 %v794, %v913
        %v920 = vadd.f32 %v795, %v906
        %v921 = vadd.f32 %v796, %v907
        %s922 = scalar_lea.vmem %s257, 240
        %v923 = vld [vmem:[%s922] sm:$0xff]
        %v924 = vld [vmem:[%s922 + $0x8] sm:$0xff]
        %v925 = vmul.f32 %v923, %v876
        %v926 = vmul.f32 %v924, %v873
        %v927 = vmul.f32 %v923, %v877
        %v928 = vmul.f32 %v924, %v874
        %v929 = vmul.f32 %v923, %v878
        %v930 = vmul.f32 %v924, %v875
        %v931 = vadd.f32 %v806, %v925
        %v932 = vadd.f32 %v807, %v926
        %v933 = vadd.f32 %v808, %v927
        %v934 = vadd.f32 %v809, %v928
        %v935 = vadd.f32 %v810, %v929
        %v936 = vadd.f32 %v811, %v930
        %v937 = vrot.slane %v285, 7
        %v938 = vrot.slane %v286, 7
        %v939 = vrot.slane %v287, 7
        %v940 = vsel %vm669, %v937, %v939
        %v941 = vrot.slane %v288, 7
        %v942 = vsel %vm669, %v938, %v941
        %v943 = vrot.slane %v289, 7
        %v944 = vrot.slane %v290, 7
        %v945 = vrot.slane %v291, 7
        %v946 = vsel %vm669, %v943, %v945
        %v947 = vrot.slane %v292, 7
        %v948 = vsel %vm669, %v944, %v947
        %v949 = vrot.slane %v293, 7
        %v950 = vrot.slane %v294, 7
        %v951 = vrot.slane %v295, 7
        %v952 = vsel %vm669, %v949, %v951
        %v953 = vrot.slane %v296, 7
        %v954 = vsel %vm669, %v950, %v953
        %v967 = vsub.f32 %v812, %v937
        %v968 = vsub.f32 %v813, %v938
        %v969 = vsub.f32 %v814, %v940
        %v970 = vsub.f32 %v815, %v942
        %v971 = vsub.f32 %v816, %v943
        %v972 = vsub.f32 %v817, %v944
        %v973 = vsub.f32 %v818, %v946
        %v974 = vsub.f32 %v819, %v948
        %v975 = vsub.f32 %v820, %v949
        %v976 = vsub.f32 %v821, %v950
        %v977 = vsub.f32 %v822, %v952
        %v978 = vsub.f32 %v823, %v954
        %v979 = vand.u32 2147483647, %v967
        %v980 = vand.u32 2147483647, %v968
        %v981 = vand.u32 2147483647, %v969
        %v982 = vand.u32 2147483647, %v970
        %v983 = vand.u32 2147483647, %v971
        %v984 = vand.u32 2147483647, %v972
        %v985 = vand.u32 2147483647, %v973
        %v986 = vand.u32 2147483647, %v974
        %v987 = vand.u32 2147483647, %v975
        %v988 = vand.u32 2147483647, %v976
        %v989 = vand.u32 2147483647, %v977
        %v990 = vand.u32 2147483647, %v978
        %vm991 = vcmask 1047554
        %v992 = vsel %vm991, %v979, 0.0
        %v993 = vsel %vm991, %v983, 0.0
        %v994 = vadd.f32 %v992, %v993
        %v995 = vsel %vm991, %v987, 0.0
        %v996 = vadd.f32 %v994, %v995
        %v997 = vsel %vm991, %v980, 0.0
        %v998 = vsel %vm991, %v984, 0.0
        %v999 = vadd.f32 %v997, %v998
        %v1000 = vsel %vm991, %v988, 0.0
        %v1001 = vadd.f32 %v999, %v1000
        %vm1002 = vcmask 1041408
        %v1003 = vsel %vm1002, %v981, 0.0
        %v1004 = vsel %vm1002, %v985, 0.0
        %v1005 = vadd.f32 %v1003, %v1004
        %v1006 = vsel %vm1002, %v989, 0.0
        %v1007 = vadd.f32 %v1005, %v1006
        %v1008 = vsel %vm1002, %v982, 0.0
        %v1009 = vsel %vm1002, %v986, 0.0
        %v1010 = vadd.f32 %v1008, %v1009
        %v1011 = vsel %vm1002, %v990, 0.0
        %v1012 = vadd.f32 %v1010, %v1011
        %v1013 = vmul.f32 %v996, %v996
        %v1014 = vmul.f32 %v1001, %v1001
        %v1015 = vmul.f32 %v1007, %v1007
        %v1016 = vmul.f32 %v1012, %v1012
        %v1021 = vrot.slane %v1013, 2
        %v1022 = vrot.slane %v1015, 2
        %v1023 = vsel %vm836, %v1021, %v1022
        %v1024 = vrot.slane %v1014, 2
        %v1025 = vrot.slane %v1016, 2
        %v1026 = vsel %vm836, %v1024, %v1025
        %v1029 = vmul.f32 %v380, %v1023
        %v1030 = vmul.f32 %v381, %v1026
        %v1031 = vmul.f32 %v1029, 1.442695
        %v1032 = vpow.pop %v1031
        %v1033 = vmul.f32 %v1030, 1.442695
        %v1034 = vpow.pop %v1033
        %s1035 = scalar_lea.vmem %s257, 112
        %v1036 = vld [vmem:[%s1035] sm:$0xff]
        %v1037 = vld [vmem:[%s1035 + $0x8] sm:$0xff]
        %v1038 = vmul.f32 %v1036, %v1032
        %v1039 = vmul.f32 %v1037, %v1034
        %v1040 = vmul.f32 %v1038, %v839
        %v1041 = vmul.f32 %v1039, %v842
        %v1042 = vmul.f32 %v1038, %v845
        %v1043 = vmul.f32 %v1039, %v848
        %v1044 = vmul.f32 %v1038, %v851
        %v1045 = vmul.f32 %v1039, %v854
        %v1046 = vadd.f32 %v914, %v1040
        %v1047 = vadd.f32 %v915, %v1041
        %v1048 = vadd.f32 %v916, %v1042
        %v1049 = vadd.f32 %v917, %v1043
        %v1050 = vadd.f32 %v918, %v1044
        %v1051 = vadd.f32 %v919, %v1045
        %v1052 = vadd.f32 %v920, %v1038
        %v1053 = vadd.f32 %v921, %v1039
        %s1054 = scalar_lea.vmem %s257, 256
        %v1055 = vld [vmem:[%s1054] sm:$0xff]
        %v1056 = vld [vmem:[%s1054 + $0x8] sm:$0xff]
        %v1057 = vmul.f32 %v1055, %v839
        %v1058 = vmul.f32 %v1056, %v842
        %v1059 = vmul.f32 %v1055, %v845
        %v1060 = vmul.f32 %v1056, %v848
        %v1061 = vmul.f32 %v1055, %v851
        %v1062 = vmul.f32 %v1056, %v854
        %v1063 = vadd.f32 %v931, %v1057
        %v1064 = vadd.f32 %v932, %v1058
        %v1065 = vadd.f32 %v933, %v1059
        %v1066 = vadd.f32 %v934, %v1060
        %v1067 = vadd.f32 %v935, %v1061
        %v1068 = vadd.f32 %v936, %v1062
        %1069 = vrot.lane.b32.xlu0 %v839, 127
        %v1070 = vpop.permute.xlu0 %1069
        %1071 = vrot.lane.b32.xlu0 %v845, 127
        %v1072 = vpop.permute.xlu0 %1071
        %1073 = vrot.lane.b32.xlu0 %v851, 127
        %v1074 = vpop.permute.xlu0 %1073
        %1075 = vrot.lane.b32.xlu0 %v842, 127
        %v1076 = vpop.permute.xlu0 %1075
        %1077 = vrot.lane.b32.xlu0 %v848, 127
        %v1078 = vpop.permute.xlu0 %1077
        %1079 = vrot.lane.b32.xlu0 %v854, 127
        %v1080 = vpop.permute.xlu0 %1079
        %v1081 = vsel %vm493, %v1070, %v1076
        %v1082 = vsel %vm493, %v1072, %v1078
        %v1083 = vsel %vm493, %v1074, %v1080
        %v1084 = vsel %vm493, %v1076, %v1070
        %v1085 = vsel %vm493, %v1078, %v1072
        %v1086 = vsel %vm493, %v1080, %v1074
        %v1087 = vsub.f32 %v1081, %v342
        %v1088 = vsub.f32 %v1084, %v345
        %v1089 = vsub.f32 %v1082, %v348
        %v1090 = vsub.f32 %v1085, %v351
        %v1091 = vsub.f32 %v1083, %v354
        %v1092 = vsub.f32 %v1086, %v357
        %v1093 = vand.u32 2147483647, %v1087
        %v1094 = vand.u32 2147483647, %v1088
        %v1095 = vand.u32 2147483647, %v1089
        %v1096 = vand.u32 2147483647, %v1090
        %v1097 = vand.u32 2147483647, %v1091
        %v1098 = vand.u32 2147483647, %v1092
        %v1099 = vadd.f32 %v1093, %v1095
        %v1100 = vadd.f32 %v1099, %v1097
        %v1101 = vadd.f32 %v1094, %v1096
        %v1102 = vadd.f32 %v1101, %v1098
        %v1103 = vmul.f32 %v1100, %v1100
        %v1104 = vmul.f32 %v1102, %v1102
        %v1105 = vmul.f32 %v380, %v1103
        %v1106 = vmul.f32 %v381, %v1104
        %v1107 = vmul.f32 %v1105, 1.442695
        %v1108 = vpow.pop %v1107
        %v1109 = vmul.f32 %v1106, 1.442695
        %v1110 = vpow.pop %v1109
        %s1111 = scalar_lea.vmem %s257, 128
        %v1112 = vld [vmem:[%s1111] sm:$0xff]
        %v1113 = vld [vmem:[%s1111 + $0x8] sm:$0xff]
        %v1114 = vmul.f32 %v1112, %v1108
        %v1115 = vmul.f32 %v1113, %v1110
        %v1116 = vmul.f32 %v1114, %v1081
        %v1117 = vmul.f32 %v1115, %v1084
        %v1118 = vmul.f32 %v1114, %v1082
        %v1119 = vmul.f32 %v1115, %v1085
        %v1120 = vmul.f32 %v1114, %v1083
        %v1121 = vmul.f32 %v1115, %v1086
        %v1122 = vadd.f32 %v1046, %v1116
        %v1123 = vadd.f32 %v1047, %v1117
        %v1124 = vadd.f32 %v1048, %v1118
        %v1125 = vadd.f32 %v1049, %v1119
        %v1126 = vadd.f32 %v1050, %v1120
        %v1127 = vadd.f32 %v1051, %v1121
        %v1128 = vadd.f32 %v1052, %v1114
        %v1129 = vadd.f32 %v1053, %v1115
        %s1130 = scalar_lea.vmem %s257, 272
        %v1131 = vld [vmem:[%s1130] sm:$0xff]
        %v1132 = vld [vmem:[%s1130 + $0x8] sm:$0xff]
        %v1133 = vmul.f32 %v1131, %v1081
        %v1134 = vmul.f32 %v1132, %v1084
        %v1135 = vmul.f32 %v1131, %v1082
        %v1136 = vmul.f32 %v1132, %v1085
        %v1137 = vmul.f32 %v1131, %v1083
        %v1138 = vmul.f32 %v1132, %v1086
        %v1139 = vadd.f32 %v1063, %v1133
        %v1140 = vadd.f32 %v1064, %v1134
        %v1141 = vadd.f32 %v1065, %v1135
        %v1142 = vadd.f32 %v1066, %v1136
        %v1143 = vadd.f32 %v1067, %v1137
        %v1144 = vadd.f32 %v1068, %v1138
        %v1145 = vrcp.pop %v1128
        %v1146 = vrcp.pop %v1129
        %v1147 = vmul.f32 %v1128, %v1145
        %v1148 = vmul.f32 %v1129, %v1146
        %v1149 = vsub.f32 2.0, %v1147
        %v1150 = vsub.f32 2.0, %v1148
        %v1151 = vmul.f32 %v1145, %v1149
        %v1152 = vmul.f32 %v1146, %v1150
        %v1153 = vmul.f32 %v1122, %v1151
        %v1154 = vmul.f32 %v1123, %v1152
        %v1155 = vmul.f32 %v1124, %v1151
        %v1156 = vmul.f32 %v1125, %v1152
        %v1157 = vmul.f32 %v1126, %v1151
        %v1158 = vmul.f32 %v1127, %v1152
        %v1165 = vrot.slane %v1139, 7
        %v1166 = vrot.slane %v1140, 7
        %v1167 = vrot.slane %v1141, 7
        %v1168 = vrot.slane %v1142, 7
        %v1169 = vrot.slane %v1143, 7
        %v1170 = vrot.slane %v1144, 7
        %v1177 = vsub.f32 %v285, %v1165
        %v1178 = vsub.f32 %v286, %v1166
        %v1179 = vsub.f32 %v287, %v1165
        %v1180 = vsub.f32 %v288, %v1166
        %v1181 = vsub.f32 %v289, %v1167
        %v1182 = vsub.f32 %v290, %v1168
        %v1183 = vsub.f32 %v291, %v1167
        %v1184 = vsub.f32 %v292, %v1168
        %v1185 = vsub.f32 %v293, %v1169
        %v1186 = vsub.f32 %v294, %v1170
        %v1187 = vsub.f32 %v295, %v1169
        %v1188 = vsub.f32 %v296, %v1170
        %v1189 = vand.u32 2147483647, %v1177
        %v1190 = vand.u32 2147483647, %v1178
        %v1191 = vand.u32 2147483647, %v1179
        %v1192 = vand.u32 2147483647, %v1180
        %v1193 = vand.u32 2147483647, %v1181
        %v1194 = vand.u32 2147483647, %v1182
        %v1195 = vand.u32 2147483647, %v1183
        %v1196 = vand.u32 2147483647, %v1184
        %v1197 = vand.u32 2147483647, %v1185
        %v1198 = vand.u32 2147483647, %v1186
        %v1199 = vand.u32 2147483647, %v1187
        %v1200 = vand.u32 2147483647, %v1188
        %s1201 = scalar_lea.vmem %s257, 352
        %v1202 = vld [vmem:[%s1201] sm:$0xff]
        %v1203 = vld [vmem:[%s1201 + $0x8] sm:$0xff]
        %v1206 = vrot.slane %v1202, 7
        %v1207 = vrot.slane %v1203, 7
        %v1210 = vadd.f32 %v285, %v1206
        %v1211 = vadd.f32 %v286, %v1207
        %v1212 = vadd.f32 %v287, %v1206
        %v1213 = vadd.f32 %v288, %v1207
        %v1214 = vadd.f32 %v289, %v1206
        %v1215 = vadd.f32 %v290, %v1207
        %v1216 = vadd.f32 %v291, %v1206
        %v1217 = vadd.f32 %v292, %v1207
        %v1218 = vadd.f32 %v293, %v1206
        %v1219 = vadd.f32 %v294, %v1207
        %v1220 = vadd.f32 %v295, %v1206
        %v1221 = vadd.f32 %v296, %v1207
        %v1222 = vmax.f32 %v1210, 1e-05
        %v1223 = vmax.f32 %v1211, 1e-05
        %v1224 = vmax.f32 %v1212, 1e-05
        %v1225 = vmax.f32 %v1213, 1e-05
        %v1226 = vmax.f32 %v1214, 1e-05
        %v1227 = vmax.f32 %v1215, 1e-05
        %v1228 = vmax.f32 %v1216, 1e-05
        %v1229 = vmax.f32 %v1217, 1e-05
        %v1230 = vmax.f32 %v1218, 1e-05
        %v1231 = vmax.f32 %v1219, 1e-05
        %v1232 = vmax.f32 %v1220, 1e-05
        %v1233 = vmax.f32 %v1221, 1e-05
        %s1234 = scalar_lea.vmem %s257, 336
        %v1235 = vld [vmem:[%s1234] sm:$0xff]
        %v1236 = vld [vmem:[%s1234 + $0x8] sm:$0xff]
        %v1239 = vrot.slane %v1235, 7
        %v1240 = vrot.slane %v1236, 7
        %v1243 = vmul.f32 %v1189, %v1239
        %v1244 = vmul.f32 %v1190, %v1240
        %v1245 = vmul.f32 %v1191, %v1239
        %v1246 = vmul.f32 %v1192, %v1240
        %v1247 = vmul.f32 %v1193, %v1239
        %v1248 = vmul.f32 %v1194, %v1240
        %v1249 = vmul.f32 %v1195, %v1239
        %v1250 = vmul.f32 %v1196, %v1240
        %v1251 = vmul.f32 %v1197, %v1239
        %v1252 = vmul.f32 %v1198, %v1240
        %v1253 = vmul.f32 %v1199, %v1239
        %v1254 = vmul.f32 %v1200, %v1240
        %v1255 = vrcp.pop %v1222
        %v1256 = vrcp.pop %v1223
        %v1257 = vrcp.pop %v1224
        %v1258 = vrcp.pop %v1225
        %v1259 = vrcp.pop %v1226
        %v1260 = vrcp.pop %v1227
        %v1261 = vrcp.pop %v1228
        %v1262 = vrcp.pop %v1229
        %v1263 = vrcp.pop %v1230
        %v1264 = vrcp.pop %v1231
        %v1265 = vrcp.pop %v1232
        %v1266 = vrcp.pop %v1233
        %v1267 = vmul.f32 %v1222, %v1255
        %v1268 = vmul.f32 %v1223, %v1256
        %v1269 = vmul.f32 %v1224, %v1257
        %v1270 = vmul.f32 %v1225, %v1258
        %v1271 = vmul.f32 %v1226, %v1259
        %v1272 = vmul.f32 %v1227, %v1260
        %v1273 = vmul.f32 %v1228, %v1261
        %v1274 = vmul.f32 %v1229, %v1262
        %v1275 = vmul.f32 %v1230, %v1263
        %v1276 = vmul.f32 %v1231, %v1264
        %v1277 = vmul.f32 %v1232, %v1265
        %v1278 = vmul.f32 %v1233, %v1266
        %v1279 = vsub.f32 2.0, %v1267
        %v1280 = vsub.f32 2.0, %v1268
        %v1281 = vsub.f32 2.0, %v1269
        %v1282 = vsub.f32 2.0, %v1270
        %v1283 = vsub.f32 2.0, %v1271
        %v1284 = vsub.f32 2.0, %v1272
        %v1285 = vsub.f32 2.0, %v1273
        %v1286 = vsub.f32 2.0, %v1274
        %v1287 = vsub.f32 2.0, %v1275
        %v1288 = vsub.f32 2.0, %v1276
        %v1289 = vsub.f32 2.0, %v1277
        %v1290 = vsub.f32 2.0, %v1278
        %v1291 = vmul.f32 %v1255, %v1279
        %v1292 = vmul.f32 %v1256, %v1280
        %v1293 = vmul.f32 %v1257, %v1281
        %v1294 = vmul.f32 %v1258, %v1282
        %v1295 = vmul.f32 %v1259, %v1283
        %v1296 = vmul.f32 %v1260, %v1284
        %v1297 = vmul.f32 %v1261, %v1285
        %v1298 = vmul.f32 %v1262, %v1286
        %v1299 = vmul.f32 %v1263, %v1287
        %v1300 = vmul.f32 %v1264, %v1288
        %v1301 = vmul.f32 %v1265, %v1289
        %v1302 = vmul.f32 %v1266, %v1290
        %v1303 = vmul.f32 %v1243, %v1291
        %v1304 = vmul.f32 %v1244, %v1292
        %v1305 = vmul.f32 %v1245, %v1293
        %v1306 = vmul.f32 %v1246, %v1294
        %v1307 = vmul.f32 %v1247, %v1295
        %v1308 = vmul.f32 %v1248, %v1296
        %v1309 = vmul.f32 %v1249, %v1297
        %v1310 = vmul.f32 %v1250, %v1298
        %v1311 = vmul.f32 %v1251, %v1299
        %v1312 = vmul.f32 %v1252, %v1300
        %v1313 = vmul.f32 %v1253, %v1301
        %v1314 = vmul.f32 %v1254, %v1302
        %v1315 = vmin.f32 %v1303, 10.0
        %v1316 = vmin.f32 %v1304, 10.0
        %v1317 = vmin.f32 %v1305, 10.0
        %v1318 = vmin.f32 %v1306, 10.0
        %v1319 = vmin.f32 %v1307, 10.0
        %v1320 = vmin.f32 %v1308, 10.0
        %v1321 = vmin.f32 %v1309, 10.0
        %v1322 = vmin.f32 %v1310, 10.0
        %v1323 = vmin.f32 %v1311, 10.0
        %v1324 = vmin.f32 %v1312, 10.0
        %v1325 = vmin.f32 %v1313, 10.0
        %v1326 = vmin.f32 %v1314, 10.0
        %s1327 = scalar_lea.vmem %s257, 320
        %v1328 = vld [vmem:[%s1327] sm:$0xff]
        %v1329 = vld [vmem:[%s1327 + $0x8] sm:$0xff]
        %v1332 = vrot.slane %v1328, 7
        %v1333 = vrot.slane %v1329, 7
        %v1336 = vmul.f32 %v1315, %v1332
        %v1337 = vmul.f32 %v1316, %v1333
        %v1338 = vmul.f32 %v1317, %v1332
        %v1339 = vmul.f32 %v1318, %v1333
        %v1340 = vmul.f32 %v1319, %v1332
        %v1341 = vmul.f32 %v1320, %v1333
        %v1342 = vmul.f32 %v1321, %v1332
        %v1343 = vmul.f32 %v1322, %v1333
        %v1344 = vmul.f32 %v1323, %v1332
        %v1345 = vmul.f32 %v1324, %v1333
        %v1346 = vmul.f32 %v1325, %v1332
        %v1347 = vmul.f32 %v1326, %v1333
        %v1348 = vmul.f32 %v1336, %v1336
        %v1349 = vmul.f32 %v1337, %v1337
        %v1350 = vmul.f32 %v1338, %v1338
        %v1351 = vmul.f32 %v1339, %v1339
        %v1352 = vmul.f32 %v1340, %v1340
        %v1353 = vmul.f32 %v1341, %v1341
        %v1354 = vmul.f32 %v1342, %v1342
        %v1355 = vmul.f32 %v1343, %v1343
        %v1356 = vmul.f32 %v1344, %v1344
        %v1357 = vmul.f32 %v1345, %v1345
        %v1358 = vmul.f32 %v1346, %v1346
        %v1359 = vmul.f32 %v1347, %v1347
        %v1360 = vsub.f32 0.0, %v1348
        %v1361 = vsub.f32 0.0, %v1349
        %v1362 = vsub.f32 0.0, %v1350
        %v1363 = vsub.f32 0.0, %v1351
        %v1364 = vsub.f32 0.0, %v1352
        %v1365 = vsub.f32 0.0, %v1353
        %v1366 = vsub.f32 0.0, %v1354
        %v1367 = vsub.f32 0.0, %v1355
        %v1368 = vsub.f32 0.0, %v1356
        %v1369 = vsub.f32 0.0, %v1357
        %v1370 = vsub.f32 0.0, %v1358
        %v1371 = vsub.f32 0.0, %v1359
        %v1372 = vmul.f32 %v1360, 1.442695
        %v1373 = vpow.pop %v1372
        %v1374 = vmul.f32 %v1361, 1.442695
        %v1375 = vpow.pop %v1374
        %v1376 = vmul.f32 %v1362, 1.442695
        %v1377 = vpow.pop %v1376
        %v1378 = vmul.f32 %v1363, 1.442695
        %v1379 = vpow.pop %v1378
        %v1380 = vmul.f32 %v1364, 1.442695
        %v1381 = vpow.pop %v1380
        %v1382 = vmul.f32 %v1365, 1.442695
        %v1383 = vpow.pop %v1382
        %v1384 = vmul.f32 %v1366, 1.442695
        %v1385 = vpow.pop %v1384
        %v1386 = vmul.f32 %v1367, 1.442695
        %v1387 = vpow.pop %v1386
        %v1388 = vmul.f32 %v1368, 1.442695
        %v1389 = vpow.pop %v1388
        %v1390 = vmul.f32 %v1369, 1.442695
        %v1391 = vpow.pop %v1390
        %v1392 = vmul.f32 %v1370, 1.442695
        %v1393 = vpow.pop %v1392
        %v1394 = vmul.f32 %v1371, 1.442695
        %v1395 = vpow.pop %v1394
        %v1396 = vsub.f32 1.0, %v1373
        %v1397 = vsub.f32 1.0, %v1375
        %v1398 = vsub.f32 1.0, %v1377
        %v1399 = vsub.f32 1.0, %v1379
        %v1400 = vsub.f32 1.0, %v1381
        %v1401 = vsub.f32 1.0, %v1383
        %v1402 = vsub.f32 1.0, %v1385
        %v1403 = vsub.f32 1.0, %v1387
        %v1404 = vsub.f32 1.0, %v1389
        %v1405 = vsub.f32 1.0, %v1391
        %v1406 = vsub.f32 1.0, %v1393
        %v1407 = vsub.f32 1.0, %v1395
        %v1408 = vmul.f32 %v1396, %v1396
        %v1409 = vmul.f32 %v1397, %v1397
        %v1410 = vmul.f32 %v1398, %v1398
        %v1411 = vmul.f32 %v1399, %v1399
        %v1412 = vmul.f32 %v1400, %v1400
        %v1413 = vmul.f32 %v1401, %v1401
        %v1414 = vmul.f32 %v1402, %v1402
        %v1415 = vmul.f32 %v1403, %v1403
        %v1416 = vmul.f32 %v1404, %v1404
        %v1417 = vmul.f32 %v1405, %v1405
        %v1418 = vmul.f32 %v1406, %v1406
        %v1419 = vmul.f32 %v1407, %v1407
        %v1420 = vsub.f32 %v1189, 0.002
        %v1421 = vsub.f32 %v1190, 0.002
        %v1422 = vsub.f32 %v1191, 0.002
        %v1423 = vsub.f32 %v1192, 0.002
        %v1424 = vsub.f32 %v1193, 0.002
        %v1425 = vsub.f32 %v1194, 0.002
        %v1426 = vsub.f32 %v1195, 0.002
        %v1427 = vsub.f32 %v1196, 0.002
        %v1428 = vsub.f32 %v1197, 0.002
        %v1429 = vsub.f32 %v1198, 0.002
        %v1430 = vsub.f32 %v1199, 0.002
        %v1431 = vsub.f32 %v1200, 0.002
        %v1432 = vmul.f32 %v1420, 1000.0
        %v1433 = vmul.f32 %v1421, 1000.0
        %v1434 = vmul.f32 %v1422, 1000.0
        %v1435 = vmul.f32 %v1423, 1000.0
        %v1436 = vmul.f32 %v1424, 1000.0
        %v1437 = vmul.f32 %v1425, 1000.0
        %v1438 = vmul.f32 %v1426, 1000.0
        %v1439 = vmul.f32 %v1427, 1000.0
        %v1440 = vmul.f32 %v1428, 1000.0
        %v1441 = vmul.f32 %v1429, 1000.0
        %v1442 = vmul.f32 %v1430, 1000.0
        %v1443 = vmul.f32 %v1431, 1000.0
        %v1444 = vxor.u32 %v1432, 2147483648
        %v1445 = vxor.u32 %v1433, 2147483648
        %v1446 = vxor.u32 %v1434, 2147483648
        %v1447 = vxor.u32 %v1435, 2147483648
        %v1448 = vxor.u32 %v1436, 2147483648
        %v1449 = vxor.u32 %v1437, 2147483648
        %v1450 = vxor.u32 %v1438, 2147483648
        %v1451 = vxor.u32 %v1439, 2147483648
        %v1452 = vxor.u32 %v1440, 2147483648
        %v1453 = vxor.u32 %v1441, 2147483648
        %v1454 = vxor.u32 %v1442, 2147483648
        %v1455 = vxor.u32 %v1443, 2147483648
        %v1456 = vmul.f32 %v1444, 1.442695
        %v1457 = vpow.pop %v1456
        %v1458 = vmul.f32 %v1445, 1.442695
        %v1459 = vpow.pop %v1458
        %v1460 = vmul.f32 %v1446, 1.442695
        %v1461 = vpow.pop %v1460
        %v1462 = vmul.f32 %v1447, 1.442695
        %v1463 = vpow.pop %v1462
        %v1464 = vmul.f32 %v1448, 1.442695
        %v1465 = vpow.pop %v1464
        %v1466 = vmul.f32 %v1449, 1.442695
        %v1467 = vpow.pop %v1466
        %v1468 = vmul.f32 %v1450, 1.442695
        %v1469 = vpow.pop %v1468
        %v1470 = vmul.f32 %v1451, 1.442695
        %v1471 = vpow.pop %v1470
        %v1472 = vmul.f32 %v1452, 1.442695
        %v1473 = vpow.pop %v1472
        %v1474 = vmul.f32 %v1453, 1.442695
        %v1475 = vpow.pop %v1474
        %v1476 = vmul.f32 %v1454, 1.442695
        %v1477 = vpow.pop %v1476
        %v1478 = vmul.f32 %v1455, 1.442695
        %v1479 = vpow.pop %v1478
        %v1480 = vadd.f32 %v1457, 1.0
        %v1481 = vadd.f32 %v1459, 1.0
        %v1482 = vadd.f32 %v1461, 1.0
        %v1483 = vadd.f32 %v1463, 1.0
        %v1484 = vadd.f32 %v1465, 1.0
        %v1485 = vadd.f32 %v1467, 1.0
        %v1486 = vadd.f32 %v1469, 1.0
        %v1487 = vadd.f32 %v1471, 1.0
        %v1488 = vadd.f32 %v1473, 1.0
        %v1489 = vadd.f32 %v1475, 1.0
        %v1490 = vadd.f32 %v1477, 1.0
        %v1491 = vadd.f32 %v1479, 1.0
        %v1492 = vrcp.pop %v1480
        %v1493 = vmul.f32 1.0, %v1492
        %v1494 = vrcp.pop %v1481
        %v1495 = vmul.f32 1.0, %v1494
        %v1496 = vrcp.pop %v1482
        %v1497 = vmul.f32 1.0, %v1496
        %v1498 = vrcp.pop %v1483
        %v1499 = vmul.f32 1.0, %v1498
        %v1500 = vrcp.pop %v1484
        %v1501 = vmul.f32 1.0, %v1500
        %v1502 = vrcp.pop %v1485
        %v1503 = vmul.f32 1.0, %v1502
        %v1504 = vrcp.pop %v1486
        %v1505 = vmul.f32 1.0, %v1504
        %v1506 = vrcp.pop %v1487
        %v1507 = vmul.f32 1.0, %v1506
        %v1508 = vrcp.pop %v1488
        %v1509 = vmul.f32 1.0, %v1508
        %v1510 = vrcp.pop %v1489
        %v1511 = vmul.f32 1.0, %v1510
        %v1512 = vrcp.pop %v1490
        %v1513 = vmul.f32 1.0, %v1512
        %v1514 = vrcp.pop %v1491
        %v1515 = vmul.f32 1.0, %v1514
        %s1516 = scalar_lea.vmem %s257, 304
        %v1517 = vld [vmem:[%s1516] sm:$0xff]
        %v1518 = vld [vmem:[%s1516 + $0x8] sm:$0xff]
        %v1531 = vrot.slane %v1177, 1
        %v1532 = vrot.slane %v1179, 1
        %v1533 = vsel %vm339, %v1531, %v1532
        %v1534 = vrot.slane %v1178, 1
        %v1535 = vrot.slane %v1180, 1
        %v1536 = vsel %vm339, %v1534, %v1535
        %v1537 = vrot.slane %v1181, 1
        %v1538 = vrot.slane %v1183, 1
        %v1539 = vsel %vm339, %v1537, %v1538
        %v1540 = vrot.slane %v1182, 1
        %v1541 = vrot.slane %v1184, 1
        %v1542 = vsel %vm339, %v1540, %v1541
        %v1543 = vrot.slane %v1185, 1
        %v1544 = vrot.slane %v1187, 1
        %v1545 = vsel %vm339, %v1543, %v1544
        %v1546 = vrot.slane %v1186, 1
        %v1547 = vrot.slane %v1188, 1
        %v1548 = vsel %vm339, %v1546, %v1547
        %v1555 = vmul.f32 %v1517, %v1533
        %v1556 = vmul.f32 %v1518, %v1536
        %v1557 = vmul.f32 %v1517, %v1539
        %v1558 = vmul.f32 %v1518, %v1542
        %v1559 = vmul.f32 %v1517, %v1545
        %v1560 = vmul.f32 %v1518, %v1548
        %v1573 = vrot.slane %v1408, 1
        %v1574 = vrot.slane %v1410, 1
        %v1575 = vsel %vm339, %v1573, %v1574
        %v1576 = vrot.slane %v1409, 1
        %v1577 = vrot.slane %v1411, 1
        %v1578 = vsel %vm339, %v1576, %v1577
        %v1579 = vrot.slane %v1412, 1
        %v1580 = vrot.slane %v1414, 1
        %v1581 = vsel %vm339, %v1579, %v1580
        %v1582 = vrot.slane %v1413, 1
        %v1583 = vrot.slane %v1415, 1
        %v1584 = vsel %vm339, %v1582, %v1583
        %v1585 = vrot.slane %v1416, 1
        %v1586 = vrot.slane %v1418, 1
        %v1587 = vsel %vm339, %v1585, %v1586
        %v1588 = vrot.slane %v1417, 1
        %v1589 = vrot.slane %v1419, 1
        %v1590 = vsel %vm339, %v1588, %v1589
        %v1597 = vmul.f32 %v1555, %v1575
        %v1598 = vmul.f32 %v1556, %v1578
        %v1599 = vmul.f32 %v1557, %v1581
        %v1600 = vmul.f32 %v1558, %v1584
        %v1601 = vmul.f32 %v1559, %v1587
        %v1602 = vmul.f32 %v1560, %v1590
        %v1615 = vrot.slane %v1493, 1
        %v1616 = vrot.slane %v1497, 1
        %v1617 = vsel %vm339, %v1615, %v1616
        %v1618 = vrot.slane %v1495, 1
        %v1619 = vrot.slane %v1499, 1
        %v1620 = vsel %vm339, %v1618, %v1619
        %v1621 = vrot.slane %v1501, 1
        %v1622 = vrot.slane %v1505, 1
        %v1623 = vsel %vm339, %v1621, %v1622
        %v1624 = vrot.slane %v1503, 1
        %v1625 = vrot.slane %v1507, 1
        %v1626 = vsel %vm339, %v1624, %v1625
        %v1627 = vrot.slane %v1509, 1
        %v1628 = vrot.slane %v1513, 1
        %v1629 = vsel %vm339, %v1627, %v1628
        %v1630 = vrot.slane %v1511, 1
        %v1631 = vrot.slane %v1515, 1
        %v1632 = vsel %vm339, %v1630, %v1631
        %v1639 = vmul.f32 %v1597, %v1617
        %v1640 = vmul.f32 %v1598, %v1620
        %v1641 = vmul.f32 %v1599, %v1623
        %v1642 = vmul.f32 %v1600, %v1626
        %v1643 = vmul.f32 %v1601, %v1629
        %v1644 = vmul.f32 %v1602, %v1632
        %v1645 = vadd.f32 %v1153, %v1639
        %v1646 = vadd.f32 %v1154, %v1640
        %v1647 = vadd.f32 %v1155, %v1641
        %v1648 = vadd.f32 %v1156, %v1642
        %v1649 = vadd.f32 %v1157, %v1643
        %v1650 = vadd.f32 %v1158, %v1644
        %v1651 = vmax.f32 %v1645, 1e-05
        %v1652 = vmax.f32 %v1646, 1e-05
        %v1653 = vmax.f32 %v1647, 1e-05
        %v1654 = vmax.f32 %v1648, 1e-05
        %v1655 = vmax.f32 %v1649, 1e-05
        %v1656 = vmax.f32 %v1650, 1e-05
        %v1657 = vmin.f32 %v1651, 1.0
        %v1658 = vmin.f32 %v1652, 1.0
        %v1659 = vmin.f32 %v1653, 1.0
        %v1660 = vmin.f32 %v1654, 1.0
        %v1661 = vmin.f32 %v1655, 1.0
        %v1662 = vmin.f32 %v1656, 1.0
        %1663 = vst [vmem:[%s230] sm:$0xff] %v1657
        %1664 = vst [vmem:[%s230 + $0x8] sm:$0xff] %v1658
        %1665 = vst [vmem:[%s230 + $0x10] sm:$0xff] %v1659
        %1666 = vst [vmem:[%s230 + $0x18] sm:$0xff] %v1660
        %1667 = vst [vmem:[%s230 + $0x20] sm:$0xff] %v1661
        %1668 = vst [vmem:[%s230 + $0x28] sm:$0xff] %v1662
        %v1669 = vsel %vm658, %v1315, 0.0
        %v1670 = vsel %vm658, %v1319, 0.0
        %v1671 = vadd.f32 %v1669, %v1670
        %v1672 = vsel %vm658, %v1323, 0.0
        %v1673 = vadd.f32 %v1671, %v1672
        %v1674 = vsel %vm658, %v1316, 0.0
        %v1675 = vsel %vm658, %v1320, 0.0
        %v1676 = vadd.f32 %v1674, %v1675
        %v1677 = vsel %vm658, %v1324, 0.0
        %v1678 = vadd.f32 %v1676, %v1677
        %v1679 = vsel %vm669, %v1317, 0.0
        %v1680 = vsel %vm669, %v1321, 0.0
        %v1681 = vadd.f32 %v1679, %v1680
        %v1682 = vsel %vm669, %v1325, 0.0
        %v1683 = vadd.f32 %v1681, %v1682
        %v1684 = vsel %vm669, %v1318, 0.0
        %v1685 = vsel %vm669, %v1322, 0.0
        %v1686 = vadd.f32 %v1684, %v1685
        %v1687 = vsel %vm669, %v1326, 0.0
        %v1688 = vadd.f32 %v1686, %v1687
        %v1693 = vrot.slane %v1673, 1
        %v1694 = vrot.slane %v1683, 1
        %v1695 = vsel %vm339, %v1693, %v1694
        %v1696 = vrot.slane %v1678, 1
        %v1697 = vrot.slane %v1688, 1
        %v1698 = vsel %vm339, %v1696, %v1697
        %1701 = vst [vmem:[%s275] sm:$0xff] %v1695
        %1702 = vst [vmem:[%s275 + $0x8] sm:$0xff] %v1698
        %v1703 = vsel %vm658, %v1189, 0.0
        %v1704 = vsel %vm658, %v1193, 0.0
        %v1705 = vadd.f32 %v1703, %v1704
        %v1706 = vsel %vm658, %v1197, 0.0
        %v1707 = vadd.f32 %v1705, %v1706
        %v1708 = vsel %vm658, %v1190, 0.0
        %v1709 = vsel %vm658, %v1194, 0.0
        %v1710 = vadd.f32 %v1708, %v1709
        %v1711 = vsel %vm658, %v1198, 0.0
        %v1712 = vadd.f32 %v1710, %v1711
        %v1713 = vsel %vm669, %v1191, 0.0
        %v1714 = vsel %vm669, %v1195, 0.0
        %v1715 = vadd.f32 %v1713, %v1714
        %v1716 = vsel %vm669, %v1199, 0.0
        %v1717 = vadd.f32 %v1715, %v1716
        %v1718 = vsel %vm669, %v1192, 0.0
        %v1719 = vsel %vm669, %v1196, 0.0
        %v1720 = vadd.f32 %v1718, %v1719
        %v1721 = vsel %vm669, %v1200, 0.0
        %v1722 = vadd.f32 %v1720, %v1721
        %v1727 = vrot.slane %v1707, 1
        %v1728 = vrot.slane %v1717, 1
        %v1729 = vsel %vm339, %v1727, %v1728
        %v1730 = vrot.slane %v1712, 1
        %v1731 = vrot.slane %v1722, 1
        %v1732 = vsel %vm339, %v1730, %v1731
        %1735 = vst [vmem:[%s284] sm:$0xff] %v1729
        %1736 = vst [vmem:[%s284 + $0x8] sm:$0xff] %v1732
        %s1737 = sand.u32 %s92, 1
        %s1738 = sand.u32 %s92, 1
        %s1739 = smul.addr %s1738, 48
        %s1740 = scalar_lea.vmem [#allocation2], %s1739
        %p1741 = scmp.lt.s32.totalorder %s20, 0
        %s1742 = scalar_select %p1741, %s20, 0
        %p1743 = scmp.lt.s32.totalorder %s21, 1
        %s1744 = scalar_select %p1743, %s21, 1
        %s1745 = smul.addr %s1744, 2
        %s1746 = smul.addr %s1742, 4
        %s1747 = sadd.s32 %s1745, %s1746
        %s1748 = smul.addr %s1747, 8
        %s1749 = scalar_lea.vmem %s3, %s1748
        %p1750 = scmp.lt.s32.totalorder %s20, 0
        %s1751 = scalar_select %p1750, %s20, 0
        %p1752 = scmp.lt.s32.totalorder %s21, 1
        %s1753 = scalar_select %p1752, %s21, 1
        %s1754 = smul.addr %s1753, 2
        %s1755 = smul.addr %s1751, 4
        %s1756 = sadd.s32 %s1754, %s1755
        %s1757 = smul.addr %s1756, 8
        %s1758 = scalar_lea.vmem %s4, %s1757
        // Predicated region
        $region29: #{denoising_sharpening.1} parent=27 // pred_check
          %p1759 = pneg %p102
        $region30: #{denoising_sharpening.1} parent=27 // pred_check_branch
          %1761 = sbr.rel (%p1759) target = $region32
        $region31: #{denoising_sharpening.1} parent=27 // pred_region
          %s1762 = smul.addr %s21, 2
          %s1763 = smul.addr %s20, 12
          %s1764 = sadd.s32 %s1762, %s1763
          %s1765 = smul.addr %s1764, 8
          %s1766 = scalar_lea.vmem %s2, %s1765
          // Predicated region
          $region33: #{denoising_sharpening.1} parent=31 // pred_check
            _
          $region34: #{denoising_sharpening.1} parent=31 // pred_check_branch
            %1768 = sbr.rel (0) target = $region36
          $region35: #{denoising_sharpening.1} parent=31 // pred_region
            // Predicated region
            $region37: #{denoising_sharpening.1} parent=35 // pred_check
              _
            $region38: #{denoising_sharpening.1} parent=35 // pred_check_branch
              %1770 = sbr.rel (0) target = $region40
            $region39: #{denoising_sharpening.1} parent=35 // pred_region
              loop: start=0, step=1, limit=1
              $region41: #{denoising_sharpening.1} parent=39 // loop_pre_header
                _
              $region42: #{denoising_sharpening.1} parent=39 // loop_header
                %s1772 = sphi 0, %s1776
                %p1773 = scmp.ge.s32.totalorder %s1772, 1
                %s1777 = sphi %s1740, %s1740
                %s1778 = sphi %s1766, %s1766
              $region43: #{denoising_sharpening.1} parent=39 // loop_header_branch
                %1775 = sbr.rel (%p1773) target = $region47
              $region44: #{denoising_sharpening.1} parent=39 // loop_body
                %v1779 = vld [vmem:[%s1777] sm:$0xff]
                %1780 = vst [vmem:[%s1778] sm:$0xff] %v1779
                %v1781 = vld [vmem:[%s1777 + $0x8] sm:$0xff]
                %1782 = vst [vmem:[%s1778 + $0x8] sm:$0xff] %v1781
                %v1783 = vld [vmem:[%s1777 + $0x10] sm:$0xff]
                %1784 = vst [vmem:[%s1778 + $0x20] sm:$0xff] %v1783
                %v1785 = vld [vmem:[%s1777 + $0x18] sm:$0xff]
                %1786 = vst [vmem:[%s1778 + $0x28] sm:$0xff] %v1785
                %v1787 = vld [vmem:[%s1777 + $0x20] sm:$0xff]
                %1788 = vst [vmem:[%s1778 + $0x40] sm:$0xff] %v1787
                %v1789 = vld [vmem:[%s1777 + $0x28] sm:$0xff]
                %1790 = vst [vmem:[%s1778 + $0x48] sm:$0xff] %v1789
              $region45: #{denoising_sharpening.1} parent=39 // loop_footer
                %s1776 = sadd.s32 1, %s1772
              $region46: #{denoising_sharpening.1} parent=39 // loop_footer_branch
                %1771 = sbr.rel target = $region42
              $region47: #{denoising_sharpening.1} parent=39 // loop_exit
                _
            $region40: #{denoising_sharpening.1} parent=35 // pred_fallthru
              _
            // Predicated region
            $region48: #{denoising_sharpening.1} parent=35 // pred_check
              _
            $region49: #{denoising_sharpening.1} parent=35 // pred_check_branch
              %1792 = sbr.rel target = $region51
            $region50: #{denoising_sharpening.1} parent=35 // pred_region
              _
            $region51: #{denoising_sharpening.1} parent=35 // pred_fallthru
              _
          $region36: #{denoising_sharpening.1} parent=31 // pred_fallthru
            _
          %1793 = vnop
        $region32: #{denoising_sharpening.1} parent=27 // pred_fallthru
          _
        // Predicated region
        $region52: #{denoising_sharpening.1} parent=27 // pred_check
          %p1794 = pneg %p130
        $region53: #{denoising_sharpening.1} parent=27 // pred_check_branch
          %1796 = sbr.rel (%p1794) target = $region55
        $region54: #{denoising_sharpening.1} parent=27 // pred_region
          _
        $region55: #{denoising_sharpening.1} parent=27 // pred_fallthru
          _
        // Predicated region
        $region56: #{denoising_sharpening.1} parent=27 // pred_check
          %p1797 = pneg %p158
        $region57: #{denoising_sharpening.1} parent=27 // pred_check_branch
          %1799 = sbr.rel (%p1797) target = $region59
        $region58: #{denoising_sharpening.1} parent=27 // pred_region
          _
        $region59: #{denoising_sharpening.1} parent=27 // pred_fallthru
          _
      $region28: #{denoising_sharpening.1} parent=5 // pred_fallthru
        _
      %p1800 = scmp.le.s32.totalorder 2, %s11
      // Predicated region
      $region60: #{denoising_sharpening.1} parent=5 // pred_check
        %p1801 = pneg %p1800
      $region61: #{denoising_sharpening.1} parent=5 // pred_check_branch
        %1803 = sbr.rel (%p1801) target = $region63
      $region62: #{denoising_sharpening.1} parent=5 // pred_region
        %s1804 = ssub.s32 %s11, 2
        // Predicated region
        $region64: #{denoising_sharpening.1} parent=62 // pred_check
          %p1805 = pneg %p108
        $region65: #{denoising_sharpening.1} parent=62 // pred_check_branch
          %1807 = sbr.rel (%p1805) target = $region67
        $region66: #{denoising_sharpening.1} parent=62 // pred_region
          %s1808 = sand.u32 %s93, 1
          %s1809 = sand.u32 %s93, 1
          %s1810 = smul.addr %s1809, 48
          %s1811 = scalar_lea.vmem [#allocation2], %s1810
        $region67: #{denoising_sharpening.1} parent=62 // pred_fallthru
          _
        // Predicated region
        $region68: #{denoising_sharpening.1} parent=62 // pred_check
          %p1812 = pneg %p136
        $region69: #{denoising_sharpening.1} parent=62 // pred_check_branch
          %1814 = sbr.rel (%p1812) target = $region71
        $region70: #{denoising_sharpening.1} parent=62 // pred_region
          %p1815 = scmp.lt.s32.totalorder %s22, 0
          %s1816 = scalar_select %p1815, %s22, 0
          %p1817 = scmp.lt.s32.totalorder %s23, 1
          %s1818 = scalar_select %p1817, %s23, 1
          %s1819 = smul.addr %s1818, 2
          %s1820 = smul.addr %s1816, 4
          %s1821 = sadd.s32 %s1819, %s1820
          %s1822 = smul.addr %s1821, 8
          %s1823 = scalar_lea.vmem %s3, %s1822
        $region71: #{denoising_sharpening.1} parent=62 // pred_fallthru
          _
        // Predicated region
        $region72: #{denoising_sharpening.1} parent=62 // pred_check
          %p1824 = pneg %p164
        $region73: #{denoising_sharpening.1} parent=62 // pred_check_branch
          %1826 = sbr.rel (%p1824) target = $region75
        $region74: #{denoising_sharpening.1} parent=62 // pred_region
          %p1827 = scmp.lt.s32.totalorder %s22, 0
          %s1828 = scalar_select %p1827, %s22, 0
          %p1829 = scmp.lt.s32.totalorder %s23, 1
          %s1830 = scalar_select %p1829, %s23, 1
          %s1831 = smul.addr %s1830, 2
          %s1832 = smul.addr %s1828, 4
          %s1833 = sadd.s32 %s1831, %s1832
          %s1834 = smul.addr %s1833, 8
          %s1835 = scalar_lea.vmem %s4, %s1834
        $region75: #{denoising_sharpening.1} parent=62 // pred_fallthru
          _
      $region63: #{denoising_sharpening.1} parent=5 // pred_fallthru
        _
    $region6: #{denoising_sharpening.1} parent=1 // loop_footer
      %s15 = sadd.s32 1, %s11
    $region7: #{denoising_sharpening.1} parent=1 // loop_footer_branch
      %10 = sbr.rel target = $region3
    $region8: #{denoising_sharpening.1} parent=1 // loop_exit
      _

</llo_original>
